<compile_context>
chip_gen: v7x
topology: tpu7x:2x2x1
jax: 0.10.0
libtpu: 0.0.40
codegen_flags: <defaults>
</compile_context>

<pallas_src>
import math

import numpy as np

import jax
import jax.numpy as jnp
from jax.experimental import pallas as pl
from jax.experimental.pallas import tpu as pltpu


def _cdiv(a, b):
    return -(-a // b)


# --------------------------------------------------------------------------
# host-side construction of the composite chunk matrices
# --------------------------------------------------------------------------
def _layer_band_matrix(taps, s, n_in, n_out, m_in, m_out):
    """Band matrix of one (Stretch2d(s) + Conv2d(1,1,(1,2s+1),pad=(0,s))) layer
    restricted to a chunk window.  Input column i corresponds to previous-stage
    position (i - m_in) relative to the chunk start, output column o to
    position (o - m_out)."""
    M = np.zeros((n_in, n_out), np.float64)
    for o in range(n_out):
        t_rel = o - m_out
        for j in range(2 * s + 1):
            u = t_rel + j - s              # position in the stretched signal
            q = u // s                     # source frame (floor division)
            M[q + m_in, o] += float(taps[j])
    return M


def _chunk_matrix(up_taps, scales, margins, prods, n_f, left_clip, right_offset):
    """Composite matrix mapping a window of conv_in frames (n_f + 2*margins[0])
    to the chunk's n_f * prod(scales) waveform samples.

    left_clip:    the true sequence starts exactly at the chunk start.
    right_offset: the true sequence ends `right_offset` conv_in frames after
                  the chunk start (None: far away).  The per-layer zero padding
                  at the global boundaries is baked in by zeroing the matching
                  rows of every per-layer band matrix before composing.
    """
    L = len(scales)
    comp = None
    for k in range(1, L + 1):
        s = scales[k - 1]
        n_in = n_f * prods[k - 1] + 2 * margins[k - 1]
        n_out = n_f * prods[k] + 2 * margins[k]
        Mk = _layer_band_matrix(np.asarray(up_taps[k - 1], np.float64), s,
                                n_in, n_out, margins[k - 1], margins[k])
        if left_clip:
            Mk[:margins[k - 1], :] = 0.0
        if right_offset is not None:
            lo = right_offset * prods[k - 1] + margins[k - 1]
            if lo < n_in:
                Mk[lo:, :] = 0.0
        comp = Mk if comp is None else comp @ Mk
    return comp


# --------------------------------------------------------------------------
# fused kernel: conv_in + the whole upsample chain for one output time tile
# --------------------------------------------------------------------------
def _make_fused_kernel(*, B, C, n_f, m0, c_out, n_chunks, n_tiles, n_mats,
                       chunk_rules):
    wlen = n_f + 2 * m0

    def kernel(cols_ref, w_ref, *rest):
        mat_refs = rest[:n_mats]
        o_ref = rest[n_mats]
        h0_ref = rest[n_mats + 1]
        j = pl.program_id(0)

        # ---- conv_in: one MXU matmul per batch (contraction K*C) ----------
        for b in range(B):
            hb = jnp.dot(w_ref[...], cols_ref[b],
                         preferred_element_type=jnp.float32)      # (C, n0)
            h0_ref[b * C:(b + 1) * C, :] = hb.astype(h0_ref.dtype)

        # ---- upsample chain: one small composite band matmul per chunk ----
        for q in range(n_chunks):
            win = h0_ref[:, q * n_f:q * n_f + wlen]               # (B*C, wlen)
            rules = chunk_rules[q]
            if n_tiles == 1:
                mat = mat_refs[rules[0][1] if rules else 0][...]
            else:
                mat = mat_refs[0][...]
                for tj, midx in rules:                # boundary chunks only
                    mat = jnp.where(j == tj, mat_refs[midx][...], mat)
            res = jnp.dot(win, mat, preferred_element_type=jnp.float32)
            o_ref[:, q * c_out:(q + 1) * c_out] = res.astype(o_ref.dtype)

    return kernel


# --------------------------------------------------------------------------
# module
# --------------------------------------------------------------------------
class ConvInUpsampleNetworkPallas:
    """Pallas port of ConvInUpsampleNetwork (defaults: no nonlinearity,
    freq_axis_kernel_size=1, nearest interpolation)."""

    def __init__(self, upsample_scales, aux_channels=80, aux_context_window=0,
                 freq_axis_kernel_size=1, nonlinear_activation=None,
                 compute_dtype=jnp.bfloat16, output_dtype=None,
                 chunk_target_lanes=512, tile_target_lanes=8192,
                 vmem_limit_bytes=None, key=None):
        assert freq_axis_kernel_size == 1
        assert nonlinear_activation is None
        # TODO(synk): nonlinear_activation / freq_axis_kernel_size>1 paths are
        # not ported (the module defaults, used by the spec, have neither).
        assert len(upsample_scales) >= 1
        self.upsample_scales = [int(s) for s in upsample_scales]
        self.aux_channels = int(aux_channels)
        self.aux_context_window = int(aux_context_window)
        self.compute_dtype = np.dtype(compute_dtype)
        self.output_dtype = None if output_dtype is None else np.dtype(output_dtype)
        self.chunk_target_lanes = int(chunk_target_lanes)
        self.tile_target_lanes = int(tile_target_lanes)

        # Generation-aware VMEM limit (v5e/v6e: 128 MiB physical, v7x: 64 MiB).
        if vmem_limit_bytes is None:
            cap = 64 * 1024 * 1024
            try:
                cap = int(pltpu.get_tpu_info().vmem_capacity_bytes)
            except Exception:
                pass
            vmem_limit_bytes = max(32 * 1024 * 1024,
                                   min(int(cap * 3 // 4), 100 * 1024 * 1024))
        self.vmem_limit_bytes = int(vmem_limit_bytes)

        K = 2 * self.aux_context_window + 1
        if key is None:
            key = jax.random.PRNGKey(0)
        keys = jax.random.split(key, 1 + len(self.upsample_scales))

        # Conv1d(C, C, K, bias=False) weight, PyTorch layout (C_out, C_in, K).
        self.w_in = jax.random.normal(
            keys[0], (aux_channels, aux_channels, K), jnp.float32) * 0.05
        # Merged weight slab (C_out, K*C_in): w_slab[o, k*C + c] = w_in[o, c, k].
        self.w_slab = (jnp.transpose(self.w_in, (0, 2, 1))
                       .reshape(aux_channels, K * aux_channels)
                       .astype(self.compute_dtype))
        # Conv2d(1,1,(1,2s+1),padding=(0,s),bias=False) -> 2s+1 time taps.
        self.up_weights = [jax.random.normal(k, (2 * s + 1,), jnp.float32) * 0.3
                           for k, s in zip(keys[1:], self.upsample_scales)]

        self._plans = {}
        self._buffered_ok = None   # None: unknown, True/False after first call

    # ---------------------------------------------------------------- plan
    def _get_plan(self, B, T, out_bytes):
        cache_key = (B, T, out_bytes)
        if cache_key in self._plans:
            return self._plans[cache_key]

        scales = self.upsample_scales
        L = len(scales)
        C = self.aux_channels
        K = 2 * self.aux_context_window + 1
        cdt_b = self.compute_dtype.itemsize

        prods = [1] * (L + 1)
        for k in range(1, L + 1):
            prods[k] = prods[k - 1] * scales[k - 1]
        P = prods[L]
        margins = [0] * (L + 1)
        for k in range(L, 0, -1):
            margins[k - 1] = _cdiv(margins[k], scales[k - 1]) + 1
        m0 = margins[0]

        # chunk geometry: lane-dense chunk output, window covers >= m0 frames
        unit = 128 // math.gcd(P, 128)
        n_f = unit * max(1, _cdiv(m0, unit),
                         _cdiv(self.chunk_target_lanes, unit * P))
        c_out = n_f * P
        wlen = n_f + 2 * m0

        n_ck = _cdiv(T, n_f)                 # chunks containing real frames
        r = T - (n_ck - 1) * n_f             # real frames in the last chunk

        # boundary chunks: bake the conv zero padding into dedicated matrices
        special_defs = {0: [True, None]}
        g_r = n_ck - 1
        right_specials = [g_r - 1, g_r] if (g_r >= 1 and r < m0) else [g_r]
        for g in right_specials:
            roff = T - g * n_f
            if g in special_defs:
                special_defs[g][1] = roff
            else:
                special_defs[g] = [g == 0, roff]

        mats_np = [_chunk_matrix(self.up_weights, scales, margins, prods,
                                 n_f, False, None)]
        special_mat_idx = {}
        for g in sorted(special_defs):
            left, roff = special_defs[g]
            special_mat_idx[g] = len(mats_np)
            mats_np.append(_chunk_matrix(self.up_weights, scales, margins,
                                         prods, n_f, left, roff))
        mats = tuple(jnp.asarray(m.astype(np.float32)).astype(self.compute_dtype)
                     for m in mats_np)
        n_mats = len(mats)

        # chunks per tile: bounded by the lane target and the VMEM budget
        budget = int(self.vmem_limit_bytes * 0.6)

        def step_vmem(nc):
            n0 = n_f * nc + 2 * m0
            return (2 * B * C * nc * c_out * out_bytes      # output block
                    + 2 * B * K * C * n0 * cdt_b            # cols block
                    + 2 * C * K * C * cdt_b                 # conv weight slab
                    + 2 * n_mats * wlen * c_out * cdt_b     # composite mats
                    + B * C * n0 * cdt_b)                   # conv_in scratch

        max_nc = max(1, min(n_ck, self.tile_target_lanes // max(c_out, 1)))
        feasible = [nc for nc in range(1, max_nc + 1) if step_vmem(nc) <= budget]
        if not feasible:
            feasible = [1]
        n_chunks = min(feasible,
                       key=lambda nc: (_cdiv(n_ck, nc) * nc - n_ck, -nc))

        n_ck_pad = _cdiv(n_ck, n_chunks) * n_chunks
        n_tiles = n_ck_pad // n_chunks
        F = n_f * n_chunks
        T_pad = n_ck_pad * n_f
        n0 = F + 2 * m0
        tile_out = n_chunks * c_out

        chunk_rules = [[] for _ in range(n_chunks)]
        for g, midx in special_mat_idx.items():
            chunk_rules[g % n_chunks].append((g // n_chunks, midx))

        plan = dict(P=P, K=K, m0=m0, n_f=n_f, c_out=c_out, wlen=wlen,
                    n_chunks=n_chunks, n_tiles=n_tiles, F=F, T_pad=T_pad,
                    n0=n0, tile_out=tile_out, mats=mats, n_mats=n_mats,
                    chunk_rules=chunk_rules)
        self._plans[cache_key] = plan
        return plan

    # --------------------------------------------------------- pallas_call
    def _pallas_call(self, plan, B, C, out_dtype, single_buffer):
        K = plan["K"]
        n0, n_tiles, tile_out = plan["n0"], plan["n_tiles"], plan["tile_out"]
        T_pad, P = plan["T_pad"], plan["P"]
        mats = plan["mats"]

        kernel = _make_fused_kernel(
            B=B, C=C, n_f=plan["n_f"], m0=plan["m0"], c_out=plan["c_out"],
            n_chunks=plan["n_chunks"], n_tiles=n_tiles,
            n_mats=plan["n_mats"], chunk_rules=plan["chunk_rules"])

        const_kw = dict(pipeline_mode=pl.Buffered(1)) if single_buffer else {}

        in_specs = [
            pl.BlockSpec((None, B, K * C, n0), lambda j: (j, 0, 0, 0)),
            pl.BlockSpec((C, K * C), lambda j: (0, 0), **const_kw),
        ]
        in_specs += [pl.BlockSpec(m.shape, lambda j: (0, 0), **const_kw)
                     for m in mats]

        return pl.pallas_call(
            kernel,
            out_shape=jax.ShapeDtypeStruct((B * C, T_pad * P), out_dtype),
            grid=(n_tiles,),
            in_specs=in_specs,
            out_specs=pl.BlockSpec((B * C, tile_out), lambda j: (0, j)),
            scratch_shapes=[pltpu.VMEM((B * C, n0), self.compute_dtype)],
            compiler_params=pltpu.CompilerParams(
                dimension_semantics=("parallel",),
                vmem_limit_bytes=self.vmem_limit_bytes,
            ),
        )

    def _run(self, plan, B, C, cols, out_dtype):
        if self._buffered_ok is not False:
            try:
                out = self._pallas_call(plan, B, C, out_dtype, True)(
                    cols, self.w_slab, *plan["mats"])
                self._buffered_ok = True
                return out
            except Exception:
                if self._buffered_ok:      # single-buffering worked before;
                    raise                  # this is a real error
                self._buffered_ok = False
        return self._pallas_call(plan, B, C, out_dtype, False)(
            cols, self.w_slab, *plan["mats"])

    # ------------------------------------------------------------- forward
    def __call__(self, c):
        assert c.ndim == 3
        B, C, T = c.shape
        assert C == self.aux_channels
        out_dtype = self.output_dtype or c.dtype
        plan = self._get_plan(B, T, np.dtype(out_dtype).itemsize)
        K, m0 = plan["K"], plan["m0"]
        F, n0, T_pad = plan["F"], plan["n0"], plan["T_pad"]
        n_tiles, P = plan["n_tiles"], plan["P"]
        W = self.aux_context_window

        # ReplicationPad1d(W) + margin/padding frames (the boundary matrices
        # zero their contribution / the final slice trims the padded tail).
        pad_l = W + m0
        pad_r = W + m0 + (T_pad - T)
        cpad = jnp.pad(c, ((0, 0), (0, 0), (pad_l, pad_r)),
                       mode="edge").astype(self.compute_dtype)

        # Wrapper-side im2col: cols[j, b, k*C + ch, t] = cpad[b, ch, j*F + k + t]
        g = (np.arange(n_tiles)[:, None, None] * F
             + np.arange(K)[None, :, None]
             + np.arange(n0)[None, None, :])
        cols = cpad[:, :, g]                                    # (B, C, nt, K, n0)
        cols = jnp.transpose(cols, (2, 0, 3, 1, 4)).reshape(n_tiles, B, K * C, n0)

        out_flat = self._run(plan, B, C, cols, out_dtype)       # (B*C, T_pad*P)
        return out_flat[:, :T * P].reshape(B, C, T * P)


# --------------------------------------------------------------------------
# exact (float64, numpy) reference of the PyTorch module semantics
# --------------------------------------------------------------------------
def reference_forward_np(c, w_in, up_taps, scales, W):
    c = np.asarray(c, np.float64)
    w_in = np.asarray(w_in, np.float64)
    B, C, T = c.shape
    K = 2 * W + 1
    cp = np.pad(c, ((0, 0), (0, 0), (W, W)), mode="edge")     # ReplicationPad1d
    x = np.zeros((B, w_in.shape[0], T), np.float64)
    for k in range(K):                                        # Conv1d, bias=False
        x += np.einsum("oc,bct->bot", w_in[:, :, k], cp[:, :, k:k + T])
    for s, w in zip(scales, up_taps):                         # Stretch2d + Conv2d
        w = np.asarray(w, np.float64)
        xu = np.repeat(x, s, axis=-1)
        xp = np.pad(xu, ((0, 0), (0, 0), (s, s)))
        tout = x.shape[-1] * s
        y = np.zeros((B, x.shape[1], tout), np.float64)
        for j in range(2 * s + 1):
            y += w[j] * xp[:, :, j:j + tout]
        x = y
    return x


# --------------------------------------------------------------------------
if __name__ == "__main__":
    key = jax.random.PRNGKey(0)
    k_d1, k_p1, k_d2, k_p2, k_d3, k_p3 = jax.random.split(key, 6)

    # ---- config 1: scales [4,4], context window 2 --------------------------
    B, C, T = 2, 80, 16
    scales = [4, 4]
    W = 2
    c = jax.random.normal(k_d1, (B, C, T), jnp.float32)

    net_small = ConvInUpsampleNetworkPallas(                   # 2 tiles x 1 chunk
        scales, aux_channels=C, aux_context_window=W, compute_dtype=jnp.float32,
        chunk_target_lanes=128, tile_target_lanes=128, key=k_p1)
    net_big = ConvInUpsampleNetworkPallas(                     # 1 tile  x 2 chunks
        scales, aux_channels=C, aux_context_window=W, compute_dtype=jnp.float32,
        chunk_target_lanes=128, tile_target_lanes=8192, key=k_p1)
    net_pad = ConvInUpsampleNetworkPallas(                     # padded single chunk
        scales, aux_channels=C, aux_context_window=W, compute_dtype=jnp.float32,
        chunk_target_lanes=512, tile_target_lanes=8192, key=k_p1)
    net_bf16 = ConvInUpsampleNetworkPallas(                    # default bf16 path
        scales, aux_channels=C, aux_context_window=W, compute_dtype=jnp.bfloat16,
        chunk_target_lanes=128, tile_target_lanes=8192, key=k_p1)

    out_small = jax.block_until_ready(net_small(c))
    out_big = jax.block_until_ready(net_big(c))
    out_pad = jax.block_until_ready(net_pad(c))
    out_bf16 = jax.block_until_ready(net_bf16(c))

    T_wav = T * int(np.prod(scales))
    assert out_small.shape == (B, C, T_wav), out_small.shape
    ref = reference_forward_np(c, net_small.w_in, net_small.up_weights, scales, W)

    err = float(np.max(np.abs(np.asarray(out_small, np.float64) - ref)))
    assert np.allclose(np.asarray(out_small, np.float64), ref,
                       atol=5e-3, rtol=5e-3), err
    err_b = float(jnp.max(jnp.abs(out_small - out_big)))
    assert jnp.allclose(out_small, out_big, atol=1e-4, rtol=1e-4), err_b
    err_p = float(jnp.max(jnp.abs(out_small - out_pad)))
    assert jnp.allclose(out_small, out_pad, atol=1e-4, rtol=1e-4), err_p
    err_h = float(np.max(np.abs(np.asarray(out_bf16, np.float64) - ref)))
    assert np.allclose(np.asarray(out_bf16, np.float64), ref,
                       atol=2.5e-1, rtol=1e-1), err_h

    # ---- config 2: odd scales, no context window, heavy padding path -------
    B2, C2, T2 = 1, 32, 8
    scales2 = [2, 3]
    net2 = ConvInUpsampleNetworkPallas(
        scales2, aux_channels=C2, aux_context_window=0,
        compute_dtype=jnp.float32, chunk_target_lanes=128, key=k_p2)
    c2 = jax.random.normal(k_d2, (B2, C2, T2), jnp.float32)
    out2 = jax.block_until_ready(net2(c2))
    assert out2.shape == (B2, C2, T2 * 6), out2.shape
    ref2 = reference_forward_np(c2, net2.w_in, net2.up_weights, scales2, 0)
    err2 = float(np.max(np.abs(np.asarray(out2, np.float64) - ref2)))
    assert np.allclose(np.asarray(out2, np.float64), ref2,
                       atol=5e-3, rtol=5e-3), err2

    # ---- config 3: awkward T (last chunk almost empty), both tilings -------
    B3, C3, T3 = 1, 16, 17
    scales3 = [4, 4]
    W3 = 1
    c3 = jax.random.normal(k_d3, (B3, C3, T3), jnp.float32)
    net3a = ConvInUpsampleNetworkPallas(                       # 1 tile x 3 chunks
        scales3, aux_channels=C3, aux_context_window=W3, compute_dtype=jnp.float32,
        chunk_target_lanes=128, tile_target_lanes=8192, key=k_p3)
    net3b = ConvInUpsampleNetworkPallas(                       # 3 tiles x 1 chunk
        scales3, aux_channels=C3, aux_context_window=W3, compute_dtype=jnp.float32,
        chunk_target_lanes=128, tile_target_lanes=256, key=k_p3)
    out3a = jax.block_until_ready(net3a(c3))
    out3b = jax.block_until_ready(net3b(c3))
    assert out3a.shape == (B3, C3, T3 * 16), out3a.shape
    ref3 = reference_forward_np(c3, net3a.w_in, net3a.up_weights, scales3, W3)
    err3a = float(np.max(np.abs(np.asarray(out3a, np.float64) - ref3)))
    assert np.allclose(np.asarray(out3a, np.float64), ref3,
                       atol=5e-3, rtol=5e-3), err3a
    err3b = float(np.max(np.abs(np.asarray(out3b, np.float64) - ref3)))
    assert np.allclose(np.asarray(out3b, np.float64), ref3,
                       atol=5e-3, rtol=5e-3), err3b

    print("KERNEL_OK")
</pallas_src>

<mosaic_0001>
module attributes {stable_mosaic.version = 11 : i64} {
  func.func @kernel(%arg0: i32, %arg1: memref<1x2x400x12xf32, #tpu.memory_space<vmem>>, %arg2: memref<80x400xf32, #tpu.memory_space<vmem>>, %arg3: memref<12x128xf32, #tpu.memory_space<vmem>>, %arg4: memref<12x128xf32, #tpu.memory_space<vmem>>, %arg5: memref<12x128xf32, #tpu.memory_space<vmem>>, %arg6: memref<160x128xf32, #tpu.memory_space<vmem>>, %arg7: memref<160x12xf32, #tpu.memory_space<vmem>>) attributes {dimension_semantics = [#tpu.dimension_semantics<parallel>], iteration_bounds = array<i64: 2>, scalar_prefetch = 0 : i64, scratch_operands = 1 : i64, tpu.core_type = #tpu.core_type<tc>, window_params = [{transform_indices = @transform_0, window_bounds = array<i64: 1, 2, 400, 12>}, {pipeline_mode = #tpu.pipeline_mode<synchronous>, transform_indices = @transform_1, window_bounds = array<i64: 80, 400>}, {pipeline_mode = #tpu.pipeline_mode<synchronous>, transform_indices = @transform_2, window_bounds = array<i64: 12, 128>}, {pipeline_mode = #tpu.pipeline_mode<synchronous>, transform_indices = @transform_3, window_bounds = array<i64: 12, 128>}, {pipeline_mode = #tpu.pipeline_mode<synchronous>, transform_indices = @transform_4, window_bounds = array<i64: 12, 128>}, {transform_indices = @transform_5, window_bounds = array<i64: 160, 128>}]} {
    %c0 = arith.constant 0 : index
    %c0_0 = arith.constant 0 : index
    %0 = vector.load %arg2[%c0, %c0_0] : memref<80x400xf32, #tpu.memory_space<vmem>>, vector<80x400xf32>
    %c0_1 = arith.constant 0 : index
    %c0_2 = arith.constant 0 : index
    %c0_3 = arith.constant 0 : index
    %c0_4 = arith.constant 0 : index
    %1 = vector.load %arg1[%c0_1, %c0_2, %c0_3, %c0_4] : memref<1x2x400x12xf32, #tpu.memory_space<vmem>>, vector<1x1x400x12xf32>
    %2 = vector.shape_cast %1 : vector<1x1x400x12xf32> to vector<400x12xf32>
    %cst = arith.constant dense<0.000000e+00> : vector<80x12xf32>
    %3 = tpu.matmul %0, %2, %cst {dimension_numbers = #tpu.dot_dimension_numbers<[1], [0], [0], [1], [0, 0, 1, 1], [], []>} : vector<80x400xf32>, vector<400x12xf32>, vector<80x12xf32> -> vector<80x12xf32>
    %c0_5 = arith.constant 0 : index
    %c0_6 = arith.constant 0 : index
    %4 = vector.load %arg7[%c0_5, %c0_6] : memref<160x12xf32, #tpu.memory_space<vmem>>, vector<80x12xf32>
    tpu.vector_store %arg7[%c0_5, %c0_6], %3 {strides = array<i32>} : memref<160x12xf32, #tpu.memory_space<vmem>>, vector<80x12xf32>,
    %c0_7 = arith.constant 0 : index
    %c0_8 = arith.constant 0 : index
    %5 = vector.load %arg2[%c0_7, %c0_8] : memref<80x400xf32, #tpu.memory_space<vmem>>, vector<80x400xf32>
    %c0_9 = arith.constant 0 : index
    %c1 = arith.constant 1 : index
    %c0_10 = arith.constant 0 : index
    %c0_11 = arith.constant 0 : index
    %6 = vector.load %arg1[%c0_9, %c1, %c0_10, %c0_11] : memref<1x2x400x12xf32, #tpu.memory_space<vmem>>, vector<1x1x400x12xf32>
    %7 = vector.shape_cast %6 : vector<1x1x400x12xf32> to vector<400x12xf32>
    %cst_12 = arith.constant dense<0.000000e+00> : vector<80x12xf32>
    %8 = tpu.matmul %5, %7, %cst_12 {dimension_numbers = #tpu.dot_dimension_numbers<[1], [0], [0], [1], [0, 0, 1, 1], [], []>} : vector<80x400xf32>, vector<400x12xf32>, vector<80x12xf32> -> vector<80x12xf32>
    %c80 = arith.constant 80 : index
    %c0_13 = arith.constant 0 : index
    %9 = vector.load %arg7[%c80, %c0_13] : memref<160x12xf32, #tpu.memory_space<vmem>>, vector<80x12xf32>
    tpu.vector_store %arg7[%c80, %c0_13], %8 {strides = array<i32>} : memref<160x12xf32, #tpu.memory_space<vmem>>, vector<80x12xf32>,
    %c0_14 = arith.constant 0 : index
    %c0_15 = arith.constant 0 : index
    %10 = vector.load %arg7[%c0_14, %c0_15] : memref<160x12xf32, #tpu.memory_space<vmem>>, vector<160x12xf32>
    %c0_16 = arith.constant 0 : index
    %c0_17 = arith.constant 0 : index
    %11 = vector.load %arg3[%c0_16, %c0_17] : memref<12x128xf32, #tpu.memory_space<vmem>>, vector<12x128xf32>
    %c0_i32 = arith.constant 0 : i32
    %12 = arith.cmpi eq, %arg0, %c0_i32 : i32
    %c0_18 = arith.constant 0 : index
    %c0_19 = arith.constant 0 : index
    %13 = vector.load %arg4[%c0_18, %c0_19] : memref<12x128xf32, #tpu.memory_space<vmem>>, vector<12x128xf32>
    %14 = arith.select %12, %13, %11 : vector<12x128xf32>
    %c1_i32 = arith.constant 1 : i32
    %15 = arith.cmpi eq, %arg0, %c1_i32 : i32
    %c0_20 = arith.constant 0 : index
    %c0_21 = arith.constant 0 : index
    %16 = vector.load %arg5[%c0_20, %c0_21] : memref<12x128xf32, #tpu.memory_space<vmem>>, vector<12x128xf32>
    %17 = arith.select %15, %16, %14 : vector<12x128xf32>
    %cst_22 = arith.constant dense<0.000000e+00> : vector<160x128xf32>
    %18 = tpu.matmul %10, %17, %cst_22 {dimension_numbers = #tpu.dot_dimension_numbers<[1], [0], [0], [1], [0, 0, 1, 1], [], []>} : vector<160x12xf32>, vector<12x128xf32>, vector<160x128xf32> -> vector<160x128xf32>
    %c0_23 = arith.constant 0 : index
    %c0_24 = arith.constant 0 : index
    %19 = vector.load %arg6[%c0_23, %c0_24] : memref<160x128xf32, #tpu.memory_space<vmem>>, vector<160x128xf32>
    tpu.vector_store %arg6[%c0_23, %c0_24], %18 {strides = array<i32>} : memref<160x128xf32, #tpu.memory_space<vmem>>, vector<160x128xf32>,
    return
  }
  func.func @transform_0(%arg0: i32) -> (i32, i32, i32, i32) {
    %c0_i32 = arith.constant 0 : i32
    %c0_i32_0 = arith.constant 0 : i32
    %c0_i32_1 = arith.constant 0 : i32
    %c0_i32_2 = arith.constant 0 : i32
    return %arg0, %c0_i32, %c0_i32_0, %c0_i32_1 : i32, i32, i32, i32
  }
  func.func @transform_1(%arg0: i32) -> (i32, i32) {
    %c0_i32 = arith.constant 0 : i32
    %c0_i32_0 = arith.constant 0 : i32
    %c0_i32_1 = arith.constant 0 : i32
    return %c0_i32, %c0_i32_0 : i32, i32
  }
  func.func @transform_2(%arg0: i32) -> (i32, i32) {
    %c0_i32 = arith.constant 0 : i32
    %c0_i32_0 = arith.constant 0 : i32
    %c0_i32_1 = arith.constant 0 : i32
    return %c0_i32, %c0_i32_0 : i32, i32
  }
  func.func @transform_3(%arg0: i32) -> (i32, i32) {
    %c0_i32 = arith.constant 0 : i32
    %c0_i32_0 = arith.constant 0 : i32
    %c0_i32_1 = arith.constant 0 : i32
    return %c0_i32, %c0_i32_0 : i32, i32
  }
  func.func @transform_4(%arg0: i32) -> (i32, i32) {
    %c0_i32 = arith.constant 0 : i32
    %c0_i32_0 = arith.constant 0 : i32
    %c0_i32_1 = arith.constant 0 : i32
    return %c0_i32, %c0_i32_0 : i32, i32
  }
  func.func @transform_5(%arg0: i32) -> (i32, i32) {
    %c0_i32 = arith.constant 0 : i32
    %c0_i32_0 = arith.constant 0 : i32
    return %c0_i32, %arg0 : i32, i32
  }
}

module attributes {stable_mosaic.version = 11 : i64} {
  func.func @kernel(%arg0: i32, %arg1: memref<1x2x400x12xf32, #tpu.memory_space<vmem>>, %arg2: memref<80x400xf32, #tpu.memory_space<vmem>>, %arg3: memref<12x128xf32, #tpu.memory_space<vmem>>, %arg4: memref<12x128xf32, #tpu.memory_space<vmem>>, %arg5: memref<12x128xf32, #tpu.memory_space<vmem>>, %arg6: memref<160x128xf32, #tpu.memory_space<vmem>>, %arg7: memref<160x12xf32, #tpu.memory_space<vmem>>) attributes {dimension_semantics = [#tpu.dimension_semantics<parallel>], iteration_bounds = array<i64: 2>, scalar_prefetch = 0 : i64, scratch_operands = 1 : i64, tpu.core_type = #tpu.core_type<tc>, window_params = [{transform_indices = @transform_0, window_bounds = array<i64: 1, 2, 400, 12>}, {pipeline_mode = #tpu.pipeline_mode<synchronous>, transform_indices = @transform_1, window_bounds = array<i64: 80, 400>}, {pipeline_mode = #tpu.pipeline_mode<synchronous>, transform_indices = @transform_2, window_bounds = array<i64: 12, 128>}, {pipeline_mode = #tpu.pipeline_mode<synchronous>, transform_indices = @transform_3, window_bounds = array<i64: 12, 128>}, {pipeline_mode = #tpu.pipeline_mode<synchronous>, transform_indices = @transform_4, window_bounds = array<i64: 12, 128>}, {transform_indices = @transform_5, window_bounds = array<i64: 160, 128>}]} {
    %c0 = arith.constant 0 : index
    %c0_0 = arith.constant 0 : index
    %0 = vector.load %arg2[%c0, %c0_0] : memref<80x400xf32, #tpu.memory_space<vmem>>, vector<80x400xf32>
    %c0_1 = arith.constant 0 : index
    %c0_2 = arith.constant 0 : index
    %c0_3 = arith.constant 0 : index
    %c0_4 = arith.constant 0 : index
    %1 = vector.load %arg1[%c0_1, %c0_2, %c0_3, %c0_4] : memref<1x2x400x12xf32, #tpu.memory_space<vmem>>, vector<1x1x400x12xf32>
    %2 = vector.shape_cast %1 : vector<1x1x400x12xf32> to vector<400x12xf32>
    %cst = arith.constant dense<0.000000e+00> : vector<80x12xf32>
    %3 = tpu.matmul %0, %2, %cst {dimension_numbers = #tpu.dot_dimension_numbers<[1], [0], [0], [1], [0, 0, 1, 1], [], []>} : vector<80x400xf32>, vector<400x12xf32>, vector<80x12xf32> -> vector<80x12xf32>
    %c0_5 = arith.constant 0 : index
    %c0_6 = arith.constant 0 : index
    %4 = vector.load %arg7[%c0_5, %c0_6] : memref<160x12xf32, #tpu.memory_space<vmem>>, vector<80x12xf32>
    tpu.vector_store %arg7[%c0_5, %c0_6], %3 {strides = array<i32>} : memref<160x12xf32, #tpu.memory_space<vmem>>, vector<80x12xf32>,
    %c0_7 = arith.constant 0 : index
    %c0_8 = arith.constant 0 : index
    %5 = vector.load %arg2[%c0_7, %c0_8] : memref<80x400xf32, #tpu.memory_space<vmem>>, vector<80x400xf32>
    %c0_9 = arith.constant 0 : index
    %c1 = arith.constant 1 : index
    %c0_10 = arith.constant 0 : index
    %c0_11 = arith.constant 0 : index
    %6 = vector.load %arg1[%c0_9, %c1, %c0_10, %c0_11] : memref<1x2x400x12xf32, #tpu.memory_space<vmem>>, vector<1x1x400x12xf32>
    %7 = vector.shape_cast %6 : vector<1x1x400x12xf32> to vector<400x12xf32>
    %cst_12 = arith.constant dense<0.000000e+00> : vector<80x12xf32>
    %8 = tpu.matmul %5, %7, %cst_12 {dimension_numbers = #tpu.dot_dimension_numbers<[1], [0], [0], [1], [0, 0, 1, 1], [], []>} : vector<80x400xf32>, vector<400x12xf32>, vector<80x12xf32> -> vector<80x12xf32>
    %c80 = arith.constant 80 : index
    %c0_13 = arith.constant 0 : index
    %9 = vector.load %arg7[%c80, %c0_13] : memref<160x12xf32, #tpu.memory_space<vmem>>, vector<80x12xf32>
    tpu.vector_store %arg7[%c80, %c0_13], %8 {strides = array<i32>} : memref<160x12xf32, #tpu.memory_space<vmem>>, vector<80x12xf32>,
    %c0_14 = arith.constant 0 : index
    %c0_15 = arith.constant 0 : index
    %10 = vector.load %arg7[%c0_14, %c0_15] : memref<160x12xf32, #tpu.memory_space<vmem>>, vector<160x12xf32>
    %c0_16 = arith.constant 0 : index
    %c0_17 = arith.constant 0 : index
    %11 = vector.load %arg3[%c0_16, %c0_17] : memref<12x128xf32, #tpu.memory_space<vmem>>, vector<12x128xf32>
    %c0_i32 = arith.constant 0 : i32
    %12 = arith.cmpi eq, %arg0, %c0_i32 : i32
    %c0_18 = arith.constant 0 : index
    %c0_19 = arith.constant 0 : index
    %13 = vector.load %arg4[%c0_18, %c0_19] : memref<12x128xf32, #tpu.memory_space<vmem>>, vector<12x128xf32>
    %14 = arith.select %12, %13, %11 : vector<12x128xf32>
    %c1_i32 = arith.constant 1 : i32
    %15 = arith.cmpi eq, %arg0, %c1_i32 : i32
    %c0_20 = arith.constant 0 : index
    %c0_21 = arith.constant 0 : index
    %16 = vector.load %arg5[%c0_20, %c0_21] : memref<12x128xf32, #tpu.memory_space<vmem>>, vector<12x128xf32>
    %17 = arith.select %15, %16, %14 : vector<12x128xf32>
    %cst_22 = arith.constant dense<0.000000e+00> : vector<160x128xf32>
    %18 = tpu.matmul %10, %17, %cst_22 {dimension_numbers = #tpu.dot_dimension_numbers<[1], [0], [0], [1], [0, 0, 1, 1], [], []>} : vector<160x12xf32>, vector<12x128xf32>, vector<160x128xf32> -> vector<160x128xf32>
    %c0_23 = arith.constant 0 : index
    %c0_24 = arith.constant 0 : index
    %19 = vector.load %arg6[%c0_23, %c0_24] : memref<160x128xf32, #tpu.memory_space<vmem>>, vector<160x128xf32>
    tpu.vector_store %arg6[%c0_23, %c0_24], %18 {strides = array<i32>} : memref<160x128xf32, #tpu.memory_space<vmem>>, vector<160x128xf32>,
    return
  }
  func.func @transform_0(%arg0: i32) -> (i32, i32, i32, i32) {
    %c0_i32 = arith.constant 0 : i32
    %c0_i32_0 = arith.constant 0 : i32
    %c0_i32_1 = arith.constant 0 : i32
    %c0_i32_2 = arith.constant 0 : i32
    return %arg0, %c0_i32, %c0_i32_0, %c0_i32_1 : i32, i32, i32, i32
  }
  func.func @transform_1(%arg0: i32) -> (i32, i32) {
    %c0_i32 = arith.constant 0 : i32
    %c0_i32_0 = arith.constant 0 : i32
    %c0_i32_1 = arith.constant 0 : i32
    return %c0_i32, %c0_i32_0 : i32, i32
  }
  func.func @transform_2(%arg0: i32) -> (i32, i32) {
    %c0_i32 = arith.constant 0 : i32
    %c0_i32_0 = arith.constant 0 : i32
    %c0_i32_1 = arith.constant 0 : i32
    return %c0_i32, %c0_i32_0 : i32, i32
  }
  func.func @transform_3(%arg0: i32) -> (i32, i32) {
    %c0_i32 = arith.constant 0 : i32
    %c0_i32_0 = arith.constant 0 : i32
    %c0_i32_1 = arith.constant 0 : i32
    return %c0_i32, %c0_i32_0 : i32, i32
  }
  func.func @transform_4(%arg0: i32) -> (i32, i32) {
    %c0_i32 = arith.constant 0 : i32
    %c0_i32_0 = arith.constant 0 : i32
    %c0_i32_1 = arith.constant 0 : i32
    return %c0_i32, %c0_i32_0 : i32, i32
  }
  func.func @transform_5(%arg0: i32) -> (i32, i32) {
    %c0_i32 = arith.constant 0 : i32
    %c0_i32_0 = arith.constant 0 : i32
    return %c0_i32, %arg0 : i32, i32
  }
}

</mosaic_0001>

<llo_original>
// kernel: tpu_custom_call.1
$region0: #{tpu_custom_call.1}
  #allocation0 [shape = 'u32[]', space=smem, size = 0x4, offset = 0x4, fixed_abs, tag = 'smem constant byte address 0x4 - core index']
  #allocation1 [shape = 'u32[144,128]{1,0:T(1,128)}', space=vmem, size = 0x12000, scoped, tag = 'internal scratch']
  #allocation2 [shape = 'f32[160,12]{1,0:T(8,128)}', space=vmem, size = 0x14000, scoped, tag = 'scratch operand']
  %s0 = inlined_call_operand.vmem [shape: f32[2,2,400,12], index: 0, kind: input, shape index: {}]
  %s1 = inlined_call_operand.vmem [shape: f32[80,400], index: 1, kind: input, shape index: {}]
  %s2 = inlined_call_operand.vmem [shape: f32[12,128], index: 2, kind: input, shape index: {}]
  %s3 = inlined_call_operand.vmem [shape: f32[12,128], index: 3, kind: input, shape index: {}]
  %s4 = inlined_call_operand.vmem [shape: f32[12,128], index: 4, kind: input, shape index: {}]
  %s5 = inlined_call_operand.hbm [shape: f32[160,256], index: 5, kind: output, shape index: {}]
  %s6 = sld [smem:[#allocation0]]
  $region53: #{tpu_custom_call.1} parent=0
    _
  %s8 = ssub.s32 1, %s6
  %s9 = scalar_select 0, %s8, %s6
  $region1: #{tpu_custom_call.1} parent=0
    #allocation3 [shape = 'u8[163840]{0}', space=vmem, size = 0x28000, scoped, tag = 'output window, operand 0']
    #allocation4 [shape = 's32[2]{0}', space=sflag, size = 0x8, scoped, tag = 'scoped memory for tpu_custom_call.1']
    %10 = vsyncpa [#allocation4], 0
    %s11 = scalar_lea.sflag [#allocation4], 1
    %12 = vsyncpa %s11, 0
    loop: start=0, step=1, limit=4
    $region2: #{tpu_custom_call.1} parent=1 // loop_pre_header
      _
    $region3: #{tpu_custom_call.1} parent=1 // loop_header
      %s14 = sphi 0, %s18
      %p15 = scmp.ge.s32.totalorder %s14, 4
      %s24 = sphi 0, %s26
      %s27 = sphi 0, %s24
      %s28 = sphi 0, %s27
      %s44 = sphi 0, %s28
      %s48 = sphi 0, %s48
      %s50 = sphi 0, %s48
      %s51 = sphi 0, %s50
      %s65 = sphi 0, %s51
      %s69 = sphi 0, %s69
      %s71 = sphi 0, %s69
      %s72 = sphi 0, %s71
      %s86 = sphi 0, %s72
      %s90 = sphi 0, %s90
      %s92 = sphi 0, %s90
      %s93 = sphi 0, %s92
      %s107 = sphi 0, %s93
      %s111 = sphi 0, %s111
      %s113 = sphi 0, %s111
      %s114 = sphi 0, %s113
      %s128 = sphi 0, %s114
      %s134 = sphi 0, %s136
      %s137 = sphi 0, %s134
      %s138 = sphi 0, %s137
      %s154 = sphi 0, %s138
    $region4: #{tpu_custom_call.1} parent=1 // loop_header_branch
      %17 = sbr.rel (%p15) target = $region8
    $region5: #{tpu_custom_call.1} parent=1 // loop_body
      %s19 = ssub.s32 %s14, 1
      %s20 = ssub.s32 %s14, 2
      %s21 = sadd.s32 %s14, 1
      %s22 = ssub.s32 %s14, %s21
      %p23 = scmp.eq.s32.totalorder %s22, 0
      %s25 = sadd.s32 %s24, 1
      %s26 = scalar_select %p23, %s24, %s25
      %p29 = pneg %p23
      %p30 = scmp.eq.s32.totalorder %s14, 1
      %p31 = por %p29, %p30
      %p32 = scmp.ne.s32.totalorder %s24, %s27
      %p33 = scmp.eq.s32.totalorder %s14, 0
      %p34 = por %p32, %p33
      %p35 = scmp.ne.s32.totalorder %s24, %s27
      %p36 = scmp.eq.s32.totalorder %s19, 1
      %p37 = por %p35, %p36
      %p38 = scmp.ne.s32.totalorder %s27, %s28
      %p39 = scmp.eq.s32.totalorder %s19, 0
      %p40 = por %p38, %p39
      %p41 = scmp.ne.s32.totalorder %s27, %s28
      %p42 = scmp.eq.s32.totalorder %s20, 1
      %p43 = por %p41, %p42
      %p45 = scmp.ne.s32.totalorder %s28, %s44
      %p46 = scmp.eq.s32.totalorder %s20, 0
      %p47 = por %p45, %p46
      %s49 = sadd.s32 %s48, 1
      %p52 = scmp.eq.s32.totalorder %s14, 1
      %p53 = scmp.ne.s32.totalorder %s48, %s50
      %p54 = scmp.eq.s32.totalorder %s14, 0
      %p55 = por %p53, %p54
      %p56 = scmp.ne.s32.totalorder %s48, %s50
      %p57 = scmp.eq.s32.totalorder %s19, 1
      %p58 = por %p56, %p57
      %p59 = scmp.ne.s32.totalorder %s50, %s51
      %p60 = scmp.eq.s32.totalorder %s19, 0
      %p61 = por %p59, %p60
      %p62 = scmp.ne.s32.totalorder %s50, %s51
      %p63 = scmp.eq.s32.totalorder %s20, 1
      %p64 = por %p62, %p63
      %p66 = scmp.ne.s32.totalorder %s51, %s65
      %p67 = scmp.eq.s32.totalorder %s20, 0
      %p68 = por %p66, %p67
      %s70 = sadd.s32 %s69, 1
      %p73 = scmp.eq.s32.totalorder %s14, 1
      %p74 = scmp.ne.s32.totalorder %s69, %s71
      %p75 = scmp.eq.s32.totalorder %s14, 0
      %p76 = por %p74, %p75
      %p77 = scmp.ne.s32.totalorder %s69, %s71
      %p78 = scmp.eq.s32.totalorder %s19, 1
      %p79 = por %p77, %p78
      %p80 = scmp.ne.s32.totalorder %s71, %s72
      %p81 = scmp.eq.s32.totalorder %s19, 0
      %p82 = por %p80, %p81
      %p83 = scmp.ne.s32.totalorder %s71, %s72
      %p84 = scmp.eq.s32.totalorder %s20, 1
      %p85 = por %p83, %p84
      %p87 = scmp.ne.s32.totalorder %s72, %s86
      %p88 = scmp.eq.s32.totalorder %s20, 0
      %p89 = por %p87, %p88
      %s91 = sadd.s32 %s90, 1
      %p94 = scmp.eq.s32.totalorder %s14, 1
      %p95 = scmp.ne.s32.totalorder %s90, %s92
      %p96 = scmp.eq.s32.totalorder %s14, 0
      %p97 = por %p95, %p96
      %p98 = scmp.ne.s32.totalorder %s90, %s92
      %p99 = scmp.eq.s32.totalorder %s19, 1
      %p100 = por %p98, %p99
      %p101 = scmp.ne.s32.totalorder %s92, %s93
      %p102 = scmp.eq.s32.totalorder %s19, 0
      %p103 = por %p101, %p102
      %p104 = scmp.ne.s32.totalorder %s92, %s93
      %p105 = scmp.eq.s32.totalorder %s20, 1
      %p106 = por %p104, %p105
      %p108 = scmp.ne.s32.totalorder %s93, %s107
      %p109 = scmp.eq.s32.totalorder %s20, 0
      %p110 = por %p108, %p109
      %s112 = sadd.s32 %s111, 1
      %p115 = scmp.eq.s32.totalorder %s14, 1
      %p116 = scmp.ne.s32.totalorder %s111, %s113
      %p117 = scmp.eq.s32.totalorder %s14, 0
      %p118 = por %p116, %p117
      %p119 = scmp.ne.s32.totalorder %s111, %s113
      %p120 = scmp.eq.s32.totalorder %s19, 1
      %p121 = por %p119, %p120
      %p122 = scmp.ne.s32.totalorder %s113, %s114
      %p123 = scmp.eq.s32.totalorder %s19, 0
      %p124 = por %p122, %p123
      %p125 = scmp.ne.s32.totalorder %s113, %s114
      %p126 = scmp.eq.s32.totalorder %s20, 1
      %p127 = por %p125, %p126
      %p129 = scmp.ne.s32.totalorder %s114, %s128
      %p130 = scmp.eq.s32.totalorder %s20, 0
      %p131 = por %p129, %p130
      %s132 = ssub.s32 %s14, %s21
      %p133 = scmp.eq.s32.totalorder %s132, 0
      %s135 = sadd.s32 %s134, 1
      %s136 = scalar_select %p133, %s134, %s135
      %p139 = pneg %p133
      %p140 = scmp.eq.s32.totalorder %s14, 1
      %p141 = por %p139, %p140
      %p142 = scmp.ne.s32.totalorder %s134, %s137
      %p143 = scmp.eq.s32.totalorder %s14, 0
      %p144 = por %p142, %p143
      %p145 = scmp.ne.s32.totalorder %s134, %s137
      %p146 = scmp.eq.s32.totalorder %s19, 1
      %p147 = por %p145, %p146
      %p148 = scmp.ne.s32.totalorder %s137, %s138
      %p149 = scmp.eq.s32.totalorder %s19, 0
      %p150 = por %p148, %p149
      %p151 = scmp.ne.s32.totalorder %s137, %s138
      %p152 = scmp.eq.s32.totalorder %s20, 1
      %p153 = por %p151, %p152
      %p155 = scmp.ne.s32.totalorder %s138, %s154
      %p156 = scmp.eq.s32.totalorder %s20, 0
      %p157 = por %p155, %p156
      %p158 = scmp.le.s32.totalorder 1, %s14
      %p159 = scmp.lt.s32.totalorder %s14, 3
      %p160 = pnand %p158, %p159
      %p161 = pneg %p160
      // Predicated region
      $region9: #{tpu_custom_call.1} parent=5 // pred_check
        _
      $region10: #{tpu_custom_call.1} parent=5 // pred_check_branch
        %163 = sbr.rel (%p160) target = $region12
      $region11: #{tpu_custom_call.1} parent=5 // pred_region
        %s164 = ssub.s32 %s14, 1
        // Predicated region
        $region13: #{tpu_custom_call.1} parent=11 // pred_check
          %p165 = pneg %p61
        $region14: #{tpu_custom_call.1} parent=11 // pred_check_branch
          %167 = sbr.rel (%p165) target = $region16
        $region15: #{tpu_custom_call.1} parent=11 // pred_region
          _
        $region16: #{tpu_custom_call.1} parent=11 // pred_fallthru
          _
        // Predicated region
        $region17: #{tpu_custom_call.1} parent=11 // pred_check
          %p168 = pneg %p82
        $region18: #{tpu_custom_call.1} parent=11 // pred_check_branch
          %170 = sbr.rel (%p168) target = $region20
        $region19: #{tpu_custom_call.1} parent=11 // pred_region
          _
        $region20: #{tpu_custom_call.1} parent=11 // pred_fallthru
          _
        // Predicated region
        $region21: #{tpu_custom_call.1} parent=11 // pred_check
          %p171 = pneg %p103
        $region22: #{tpu_custom_call.1} parent=11 // pred_check_branch
          %173 = sbr.rel (%p171) target = $region24
        $region23: #{tpu_custom_call.1} parent=11 // pred_region
          _
        $region24: #{tpu_custom_call.1} parent=11 // pred_fallthru
          _
        // Predicated region
        $region25: #{tpu_custom_call.1} parent=11 // pred_check
          %p174 = pneg %p124
        $region26: #{tpu_custom_call.1} parent=11 // pred_check_branch
          %176 = sbr.rel (%p174) target = $region28
        $region27: #{tpu_custom_call.1} parent=11 // pred_region
          _
        $region28: #{tpu_custom_call.1} parent=11 // pred_fallthru
          _
      $region12: #{tpu_custom_call.1} parent=5 // pred_fallthru
        _
      %p177 = scmp.lt.s32.totalorder %s14, 2
      // Predicated region
      $region29: #{tpu_custom_call.1} parent=5 // pred_check
        %p178 = pneg %p177
      $region30: #{tpu_custom_call.1} parent=5 // pred_check_branch
        %180 = sbr.rel (%p178) target = $region32
      $region31: #{tpu_custom_call.1} parent=5 // pred_region
        // Predicated region
        $region33: #{tpu_custom_call.1} parent=31 // pred_check
          %p181 = pneg %p34
        $region34: #{tpu_custom_call.1} parent=31 // pred_check_branch
          %183 = sbr.rel (%p181) target = $region36
        $region35: #{tpu_custom_call.1} parent=31 // pred_region
          %p184 = scmp.lt.s32.totalorder %s14, 1
          %s185 = scalar_select %p184, %s14, 1
          %s186 = smul.addr %s185, 100
          %s187 = smul.addr %s186, 8
          %s188 = scalar_lea.vmem %s0, %s187
        $region36: #{tpu_custom_call.1} parent=31 // pred_fallthru
          _
      $region32: #{tpu_custom_call.1} parent=5 // pred_fallthru
        _
      %p189 = scmp.le.s32.totalorder 1, %s14
      %p190 = scmp.lt.s32.totalorder %s14, 3
      %p191 = pnand %p189, %p190
      %p192 = pneg %p191
      // Predicated region
      $region37: #{tpu_custom_call.1} parent=5 // pred_check
        _
      $region38: #{tpu_custom_call.1} parent=5 // pred_check_branch
        %194 = sbr.rel (%p191) target = $region40
      $region39: #{tpu_custom_call.1} parent=5 // pred_region
        %s195 = ssub.s32 %s14, 1
        %p196 = scmp.lt.s32.totalorder %s19, 1
        %s197 = scalar_select %p196, %s19, 1
        %s198 = smul.addr %s197, 100
        %s199 = smul.addr %s198, 8
        %s200 = scalar_lea.vmem %s0, %s199
        %p201 = pneg %p40
        %p202 = pneg %p37
        %p203 = pneg %p61
        %p204 = pneg %p58
        %p205 = pneg %p82
        %p206 = pneg %p79
        %p207 = pneg %p103
        %p208 = pneg %p100
        %p209 = pneg %p124
        %p210 = pneg %p121
        %p211 = pneg %p150
        %p212 = pneg %p147
        %s213 = sand.u32 %s137, 1
        %s214 = scalar_lea.sflag [#allocation4], %s213
        %s215 = sand.u32 %s137, 1
        %s216 = smul.addr %s215, 160
        %s217 = scalar_lea.vmem [#allocation3], %s216
        %p218 = scmp.lt.s32.totalorder %s19, 1
        %s219 = scalar_select %p218, %s19, 1
        %s220 = smul.addr %s219, 100
        %s221 = smul.addr %s220, 8
        %s222 = scalar_lea.vmem %s0, %s221
        %v223 = vld [vmem:[%s1] sm:$0xff]
        %v224 = vld [vmem:[%s1 + $0x8] sm:$0xff]
        %v225 = vld [vmem:[%s1 + $0x10] sm:$0xff]
        %v226 = vld [vmem:[%s1 + $0x18] sm:$0xff]
        %v227 = vld [vmem:[%s1 + $0x20] sm:$0xff]
        %v228 = vld [vmem:[%s1 + $0x28] sm:$0xff]
        %v229 = vld [vmem:[%s1 + $0x30] sm:$0xff]
        %v230 = vld [vmem:[%s1 + $0x38] sm:$0xff]
        %v231 = vld [vmem:[%s1 + $0x40] sm:$0xff]
        %v232 = vld [vmem:[%s1 + $0x48] sm:$0xff]
        %v233 = vld [vmem:[%s1 + $0x50] sm:$0xff]
        %v234 = vld [vmem:[%s1 + $0x58] sm:$0xff]
        %v235 = vld [vmem:[%s1 + $0x60] sm:$0xff]
        %v236 = vld [vmem:[%s1 + $0x68] sm:$0xff]
        %v237 = vld [vmem:[%s1 + $0x70] sm:$0xff]
        %v238 = vld [vmem:[%s1 + $0x78] sm:$0xff]
        %v239 = vld [vmem:[%s1 + $0x80] sm:$0xff]
        %v240 = vld [vmem:[%s1 + $0x88] sm:$0xff]
        %v241 = vld [vmem:[%s1 + $0x90] sm:$0xff]
        %v242 = vld [vmem:[%s1 + $0x98] sm:$0xff]
        %v243 = vld [vmem:[%s1 + $0xa0] sm:$0xff]
        %v244 = vld [vmem:[%s1 + $0xa8] sm:$0xff]
        %v245 = vld [vmem:[%s1 + $0xb0] sm:$0xff]
        %v246 = vld [vmem:[%s1 + $0xb8] sm:$0xff]
        %v247 = vld [vmem:[%s1 + $0xc0] sm:$0xff]
        %v248 = vld [vmem:[%s1 + $0xc8] sm:$0xff]
        %v249 = vld [vmem:[%s1 + $0xd0] sm:$0xff]
        %v250 = vld [vmem:[%s1 + $0xd8] sm:$0xff]
        %v251 = vld [vmem:[%s1 + $0xe0] sm:$0xff]
        %v252 = vld [vmem:[%s1 + $0xe8] sm:$0xff]
        %v253 = vld [vmem:[%s1 + $0xf0] sm:$0xff]
        %v254 = vld [vmem:[%s1 + $0xf8] sm:$0xff]
        %v255 = vld [vmem:[%s1 + $0x100] sm:$0xff]
        %v256 = vld [vmem:[%s1 + $0x108] sm:$0xff]
        %v257 = vld [vmem:[%s1 + $0x110] sm:$0xff]
        %v258 = vld [vmem:[%s1 + $0x118] sm:$0xff]
        %v259 = vld [vmem:[%s1 + $0x120] sm:$0xff]
        %v260 = vld [vmem:[%s1 + $0x128] sm:$0xff]
        %v261 = vld [vmem:[%s1 + $0x130] sm:$0xff]
        %v262 = vld [vmem:[%s1 + $0x138] sm:$0xff]
        %v263 = vld [vmem:[%s222] sm:$0xff]
        %v264 = vld [vmem:[%s222 + $0x8] sm:$0xff]
        %v265 = vld [vmem:[%s222 + $0x10] sm:$0xff]
        %v266 = vld [vmem:[%s222 + $0x18] sm:$0xff]
        %v267 = vld [vmem:[%s222 + $0x20] sm:$0xff]
        %v268 = vld [vmem:[%s222 + $0x28] sm:$0xff]
        %v269 = vld [vmem:[%s222 + $0x30] sm:$0xff]
        %v270 = vld [vmem:[%s222 + $0x38] sm:$0xff]
        %v271 = vld [vmem:[%s222 + $0x40] sm:$0xff]
        %v272 = vld [vmem:[%s222 + $0x48] sm:$0xff]
        %v273 = vld [vmem:[%s222 + $0x50] sm:$0xff]
        %v274 = vld [vmem:[%s222 + $0x58] sm:$0xff]
        %v275 = vld [vmem:[%s222 + $0x60] sm:$0xff]
        %v276 = vld [vmem:[%s222 + $0x68] sm:$0xff]
        %v277 = vld [vmem:[%s222 + $0x70] sm:$0xff]
        %v278 = vld [vmem:[%s222 + $0x78] sm:$0xff]
        %v279 = vld [vmem:[%s222 + $0x80] sm:$0xff]
        %v280 = vld [vmem:[%s222 + $0x88] sm:$0xff]
        %v281 = vld [vmem:[%s222 + $0x90] sm:$0xff]
        %v282 = vld [vmem:[%s222 + $0x98] sm:$0xff]
        %v283 = vld [vmem:[%s222 + $0xa0] sm:$0xff]
        %v284 = vld [vmem:[%s222 + $0xa8] sm:$0xff]
        %v285 = vld [vmem:[%s222 + $0xb0] sm:$0xff]
        %v286 = vld [vmem:[%s222 + $0xb8] sm:$0xff]
        %v287 = vld [vmem:[%s222 + $0xc0] sm:$0xff]
        %v288 = vld [vmem:[%s222 + $0xc8] sm:$0xff]
        %v289 = vld [vmem:[%s222 + $0xd0] sm:$0xff]
        %v290 = vld [vmem:[%s222 + $0xd8] sm:$0xff]
        %v291 = vld [vmem:[%s222 + $0xe0] sm:$0xff]
        %v292 = vld [vmem:[%s222 + $0xe8] sm:$0xff]
        %v293 = vld [vmem:[%s222 + $0xf0] sm:$0xff]
        %v294 = vld [vmem:[%s222 + $0xf8] sm:$0xff]
        %v295 = vld [vmem:[%s222 + $0x100] sm:$0xff]
        %v296 = vld [vmem:[%s222 + $0x108] sm:$0xff]
        %v297 = vld [vmem:[%s222 + $0x110] sm:$0xff]
        %v298 = vld [vmem:[%s222 + $0x118] sm:$0xff]
        %v299 = vld [vmem:[%s222 + $0x120] sm:$0xff]
        %v300 = vld [vmem:[%s222 + $0x128] sm:$0xff]
        %v301 = vld [vmem:[%s222 + $0x130] sm:$0xff]
        %v302 = vld [vmem:[%s222 + $0x138] sm:$0xff]
        %v303 = vld [vmem:[%s222 + $0x140] sm:$0xff]
        %v304 = vld [vmem:[%s222 + $0x148] sm:$0xff]
        %v305 = vld [vmem:[%s222 + $0x150] sm:$0xff]
        %v306 = vld [vmem:[%s222 + $0x158] sm:$0xff]
        %v307 = vld [vmem:[%s222 + $0x160] sm:$0xff]
        %v308 = vld [vmem:[%s222 + $0x168] sm:$0xff]
        %v309 = vld [vmem:[%s222 + $0x170] sm:$0xff]
        %v310 = vld [vmem:[%s222 + $0x178] sm:$0xff]
        %v311 = vld [vmem:[%s222 + $0x180] sm:$0xff]
        %v312 = vld [vmem:[%s222 + $0x188] sm:$0xff]
        %vm313 = vcmask 130048
        %v315 = vsel %vm313, %v226, 0
        %v318 = vsel %vm313, %v230, 0
        %v321 = vsel %vm313, %v234, 0
        %v324 = vsel %vm313, %v238, 0
        %v327 = vsel %vm313, %v242, 0
        %v330 = vsel %vm313, %v246, 0
        %v333 = vsel %vm313, %v250, 0
        %v336 = vsel %vm313, %v254, 0
        %v339 = vsel %vm313, %v258, 0
        %v342 = vsel %vm313, %v262, 0
        %344 = vmatprep.subr.mxu0 0.0
        %345 = vmatpush1.msra.mxu0 %v263
        %346 = vmatprep.subr.mxu0 0.0
        %347 = vmatpush1.msra.mxu0 %v264
        %348 = vmatprep.subr.mxu0 0.0
        %349 = vmatpush1.msra.mxu0 %v265
        %350 = vmatprep.subr.mxu0 0.0
        %351 = vmatpush1.msra.mxu0 %v266
        %352 = vmatprep.subr.mxu0 0.0
        %353 = vmatpush1.msra.mxu0 %v267
        %354 = vmatprep.subr.mxu0 0.0
        %355 = vmatpush1.msra.mxu0 %v268
        %356 = vmatprep.subr.mxu0 0.0
        %357 = vmatpush1.msra.mxu0 %v269
        %358 = vmatprep.subr.mxu0 0.0
        %359 = vmatpush1.msra.mxu0 %v270
        %360 = vmatprep.subr.mxu0 0.0
        %361 = vmatpush1.msra.mxu0 %v271
        %362 = vmatprep.subr.mxu0 0.0
        %363 = vmatpush1.msra.mxu0 %v272
        %364 = vmatprep.subr.mxu0 0.0
        %365 = vmatpush1.msra.mxu0 %v273
        %366 = vmatprep.subr.mxu0 0.0
        %367 = vmatpush1.msra.mxu0 %v274
        %368 = vmatprep.subr.mxu0 0.0
        %369 = vmatpush1.msra.mxu0 %v275
        %370 = vmatprep.subr.mxu0 0.0
        %371 = vmatpush1.msra.mxu0 %v276
        %372 = vmatprep.subr.mxu0 0.0
        %373 = vmatpush1.msra.mxu0 %v277
        %374 = vmatprep.subr.mxu0 0.0
        %375 = vmatpush1.msra.mxu0 %v278
        %376 = vmatprep.subr.mxu0 0.0
        %377 = vmatpush1.msra.mxu0 %v279
        %378 = vmatprep.subr.mxu0 0.0
        %379 = vmatpush1.msra.mxu0 %v280
        %380 = vmatprep.subr.mxu0 0.0
        %381 = vmatpush1.msra.mxu0 %v281
        %382 = vmatprep.subr.mxu0 0.0
        %383 = vmatpush1.msra.mxu0 %v282
        %384 = vmatprep.subr.mxu0 0.0
        %385 = vmatpush1.msra.mxu0 %v283
        %386 = vmatprep.subr.mxu0 0.0
        %387 = vmatpush1.msra.mxu0 %v284
        %388 = vmatprep.subr.mxu0 0.0
        %389 = vmatpush1.msra.mxu0 %v285
        %390 = vmatprep.subr.mxu0 0.0
        %391 = vmatpush1.msra.mxu0 %v286
        %392 = vmatprep.subr.mxu0 0.0
        %393 = vmatpush1.msra.mxu0 %v287
        %394 = vmatprep.subr.mxu0 0.0
        %395 = vmatpush1.msra.mxu0 %v288
        %396 = vmatprep.subr.mxu0 0.0
        %397 = vmatpush1.msra.mxu0 %v289
        %398 = vmatprep.subr.mxu0 0.0
        %399 = vmatpush1.msra.mxu0 %v290
        %400 = vmatprep.subr.mxu0 0.0
        %401 = vmatpush1.msra.mxu0 %v291
        %402 = vmatprep.subr.mxu0 0.0
        %403 = vmatpush1.msra.mxu0 %v292
        %404 = vmatprep.subr.mxu0 0.0
        %405 = vmatpush1.msra.mxu0 %v293
        %406 = vmatprep.subr.mxu0 0.0
        %407 = vmatpush1.msra.mxu0 %v294
        %408 = vmatprep.mubr.f32.mxu0 %v224
        %409 = vmatmul.mubr.f32.gmra.mrb[0].mxu0 %v223
        %v410 = vpop.f32.mrb[0].mxu0
        %v411 = vadd.f32 0.0, %v410
        %v412 = vpop.f32.mrb[0].mxu0
        %413 = vmatprep.mubr.f32.mxu0 %v228
        %414 = vmatmul.mubr.f32.gmra.mrb[0].mxu0 %v227
        %v415 = vpop.f32.mrb[0].mxu0
        %v416 = vadd.f32 0.0, %v415
        %v417 = vpop.f32.mrb[0].mxu0
        %418 = vmatprep.mubr.f32.mxu0 %v232
        %419 = vmatmul.mubr.f32.gmra.mrb[0].mxu0 %v231
        %v420 = vpop.f32.mrb[0].mxu0
        %v421 = vadd.f32 0.0, %v420
        %v422 = vpop.f32.mrb[0].mxu0
        %423 = vmatprep.mubr.f32.mxu0 %v236
        %424 = vmatmul.mubr.f32.gmra.mrb[0].mxu0 %v235
        %v425 = vpop.f32.mrb[0].mxu0
        %v426 = vadd.f32 0.0, %v425
        %v427 = vpop.f32.mrb[0].mxu0
        %428 = vmatprep.mubr.f32.mxu0 %v240
        %429 = vmatmul.mubr.f32.gmra.mrb[0].mxu0 %v239
        %v430 = vpop.f32.mrb[0].mxu0
        %v431 = vadd.f32 0.0, %v430
        %v432 = vpop.f32.mrb[0].mxu0
        %433 = vmatprep.mubr.f32.mxu0 %v244
        %434 = vmatmul.mubr.f32.gmra.mrb[0].mxu0 %v243
        %v435 = vpop.f32.mrb[0].mxu0
        %v436 = vadd.f32 0.0, %v435
        %v437 = vpop.f32.mrb[0].mxu0
        %438 = vmatprep.mubr.f32.mxu0 %v248
        %439 = vmatmul.mubr.f32.gmra.mrb[0].mxu0 %v247
        %v440 = vpop.f32.mrb[0].mxu0
        %v441 = vadd.f32 0.0, %v440
        %v442 = vpop.f32.mrb[0].mxu0
        %443 = vmatprep.mubr.f32.mxu0 %v252
        %444 = vmatmul.mubr.f32.gmra.mrb[0].mxu0 %v251
        %v445 = vpop.f32.mrb[0].mxu0
        %v446 = vadd.f32 0.0, %v445
        %v447 = vpop.f32.mrb[0].mxu0
        %448 = vmatprep.mubr.f32.mxu0 %v256
        %449 = vmatmul.mubr.f32.gmra.mrb[0].mxu0 %v255
        %v450 = vpop.f32.mrb[0].mxu0
        %v451 = vadd.f32 0.0, %v450
        %v452 = vpop.f32.mrb[0].mxu0
        %453 = vmatprep.mubr.f32.mxu0 %v260
        %454 = vmatmul.mubr.f32.gmra.mrb[0].mxu0 %v259
        %v455 = vpop.f32.mrb[0].mxu0
        %v456 = vadd.f32 0.0, %v455
        %v457 = vpop.f32.mrb[0].mxu0
        %458 = vdwg.mxu0
        %459 = vmatprep.subr.mxu0 0.0
        %460 = vmatpush1.msra.mxu0 %v295
        %461 = vmatprep.subr.mxu0 0.0
        %462 = vmatpush1.msra.mxu0 %v296
        %463 = vmatprep.subr.mxu0 0.0
        %464 = vmatpush1.msra.mxu0 %v297
        %465 = vmatprep.subr.mxu0 0.0
        %466 = vmatpush1.msra.mxu0 %v298
        %467 = vmatprep.subr.mxu0 0.0
        %468 = vmatpush1.msra.mxu0 %v299
        %469 = vmatprep.subr.mxu0 0.0
        %470 = vmatpush1.msra.mxu0 %v300
        %471 = vmatprep.subr.mxu0 0.0
        %472 = vmatpush1.msra.mxu0 %v301
        %473 = vmatprep.subr.mxu0 0.0
        %474 = vmatpush1.msra.mxu0 %v302
        %475 = vmatprep.subr.mxu0 0.0
        %476 = vmatpush1.msra.mxu0 %v303
        %477 = vmatprep.subr.mxu0 0.0
        %478 = vmatpush1.msra.mxu0 %v304
        %479 = vmatprep.subr.mxu0 0.0
        %480 = vmatpush1.msra.mxu0 %v305
        %481 = vmatprep.subr.mxu0 0.0
        %482 = vmatpush1.msra.mxu0 %v306
        %483 = vmatprep.subr.mxu0 0.0
        %484 = vmatpush1.msra.mxu0 %v307
        %485 = vmatprep.subr.mxu0 0.0
        %486 = vmatpush1.msra.mxu0 %v308
        %487 = vmatprep.subr.mxu0 0.0
        %488 = vmatpush1.msra.mxu0 %v309
        %489 = vmatprep.subr.mxu0 0.0
        %490 = vmatpush1.msra.mxu0 %v310
        %491 = vmatprep.subr.mxu0 0.0
        %492 = vmatpush1.msra.mxu0 %v311
        %493 = vmatprep.subr.mxu0 0.0
        %494 = vmatpush1.msra.mxu0 %v312
        %495 = vmatprep.subr.mxu0 0.0
        %496 = vmatpush1.msra.mxu0 0.0
        %497 = vmatprep.subr.mxu0 0.0
        %498 = vmatpush1.msra.mxu0 0.0
        %499 = vmatprep.subr.mxu0 0.0
        %500 = vmatpush1.msra.mxu0 0.0
        %501 = vmatprep.subr.mxu0 0.0
        %502 = vmatpush1.msra.mxu0 0.0
        %503 = vmatprep.subr.mxu0 0.0
        %504 = vmatpush1.msra.mxu0 0.0
        %505 = vmatprep.subr.mxu0 0.0
        %506 = vmatpush1.msra.mxu0 0.0
        %507 = vmatprep.subr.mxu0 0.0
        %508 = vmatpush1.msra.mxu0 0.0
        %509 = vmatprep.subr.mxu0 0.0
        %510 = vmatpush1.msra.mxu0 0.0
        %511 = vmatprep.subr.mxu0 0.0
        %512 = vmatpush1.msra.mxu0 0.0
        %513 = vmatprep.subr.mxu0 0.0
        %514 = vmatpush1.msra.mxu0 0.0
        %515 = vmatprep.subr.mxu0 0.0
        %516 = vmatpush1.msra.mxu0 0.0
        %517 = vmatprep.subr.mxu0 0.0
        %518 = vmatpush1.msra.mxu0 0.0
        %519 = vmatprep.subr.mxu0 0.0
        %520 = vmatpush1.msra.mxu0 0.0
        %521 = vmatprep.subr.mxu0 0.0
        %522 = vmatpush1.msra.mxu0 0.0
        %523 = vmatprep.mubr.f32.mxu0 %v315
        %524 = vmatmul.mubr.f32.gmra.mrb[0].mxu0 %v225
        %v525 = vpop.f32.mrb[0].mxu0
        %v526 = vadd.f32 %v411, %v525
        %v527 = vpop.f32.mrb[0].mxu0
        %528 = vmatprep.mubr.f32.mxu0 %v318
        %529 = vmatmul.mubr.f32.gmra.mrb[0].mxu0 %v229
        %v530 = vpop.f32.mrb[0].mxu0
        %v531 = vadd.f32 %v416, %v530
        %v532 = vpop.f32.mrb[0].mxu0
        %533 = vmatprep.mubr.f32.mxu0 %v321
        %534 = vmatmul.mubr.f32.gmra.mrb[0].mxu0 %v233
        %v535 = vpop.f32.mrb[0].mxu0
        %v536 = vadd.f32 %v421, %v535
        %v537 = vpop.f32.mrb[0].mxu0
        %538 = vmatprep.mubr.f32.mxu0 %v324
        %539 = vmatmul.mubr.f32.gmra.mrb[0].mxu0 %v237
        %v540 = vpop.f32.mrb[0].mxu0
        %v541 = vadd.f32 %v426, %v540
        %v542 = vpop.f32.mrb[0].mxu0
        %543 = vmatprep.mubr.f32.mxu0 %v327
        %544 = vmatmul.mubr.f32.gmra.mrb[0].mxu0 %v241
        %v545 = vpop.f32.mrb[0].mxu0
        %v546 = vadd.f32 %v431, %v545
        %v547 = vpop.f32.mrb[0].mxu0
        %548 = vmatprep.mubr.f32.mxu0 %v330
        %549 = vmatmul.mubr.f32.gmra.mrb[0].mxu0 %v245
        %v550 = vpop.f32.mrb[0].mxu0
        %v551 = vadd.f32 %v436, %v550
        %v552 = vpop.f32.mrb[0].mxu0
        %553 = vmatprep.mubr.f32.mxu0 %v333
        %554 = vmatmul.mubr.f32.gmra.mrb[0].mxu0 %v249
        %v555 = vpop.f32.mrb[0].mxu0
        %v556 = vadd.f32 %v441, %v555
        %v557 = vpop.f32.mrb[0].mxu0
        %558 = vmatprep.mubr.f32.mxu0 %v336
        %559 = vmatmul.mubr.f32.gmra.mrb[0].mxu0 %v253
        %v560 = vpop.f32.mrb[0].mxu0
        %v561 = vadd.f32 %v446, %v560
        %v562 = vpop.f32.mrb[0].mxu0
        %563 = vmatprep.mubr.f32.mxu0 %v339
        %564 = vmatmul.mubr.f32.gmra.mrb[0].mxu0 %v257
        %v565 = vpop.f32.mrb[0].mxu0
        %v566 = vadd.f32 %v451, %v565
        %v567 = vpop.f32.mrb[0].mxu0
        %568 = vmatprep.mubr.f32.mxu0 %v342
        %569 = vmatmul.mubr.f32.gmra.mrb[0].mxu0 %v261
        %v570 = vpop.f32.mrb[0].mxu0
        %v571 = vadd.f32 %v456, %v570
        %v572 = vpop.f32.mrb[0].mxu0
        %573 = vdwg.mxu0
        %vm574 = vcmask 97280
        %575 = vst.msk [vmem:[#allocation2] sm:$0xff] %vm574, %v526
        %576 = vst.msk [vmem:[#allocation2 + $0x8] sm:$0xff] %vm574, %v531
        %577 = vst.msk [vmem:[#allocation2 + $0x10] sm:$0xff] %vm574, %v536
        %578 = vst.msk [vmem:[#allocation2 + $0x18] sm:$0xff] %vm574, %v541
        %579 = vst.msk [vmem:[#allocation2 + $0x20] sm:$0xff] %vm574, %v546
        %580 = vst.msk [vmem:[#allocation2 + $0x28] sm:$0xff] %vm574, %v551
        %581 = vst.msk [vmem:[#allocation2 + $0x30] sm:$0xff] %vm574, %v556
        %582 = vst.msk [vmem:[#allocation2 + $0x38] sm:$0xff] %vm574, %v561
        %583 = vst.msk [vmem:[#allocation2 + $0x40] sm:$0xff] %vm574, %v566
        %584 = vst.msk [vmem:[#allocation2 + $0x48] sm:$0xff] %vm574, %v571
        %v585 = vld [vmem:[%s1] sm:$0xff]
        %v586 = vld [vmem:[%s1 + $0x8] sm:$0xff]
        %v587 = vld [vmem:[%s1 + $0x10] sm:$0xff]
        %v588 = vld [vmem:[%s1 + $0x18] sm:$0xff]
        %v589 = vld [vmem:[%s1 + $0x20] sm:$0xff]
        %v590 = vld [vmem:[%s1 + $0x28] sm:$0xff]
        %v591 = vld [vmem:[%s1 + $0x30] sm:$0xff]
        %v592 = vld [vmem:[%s1 + $0x38] sm:$0xff]
        %v593 = vld [vmem:[%s1 + $0x40] sm:$0xff]
        %v594 = vld [vmem:[%s1 + $0x48] sm:$0xff]
        %v595 = vld [vmem:[%s1 + $0x50] sm:$0xff]
        %v596 = vld [vmem:[%s1 + $0x58] sm:$0xff]
        %v597 = vld [vmem:[%s1 + $0x60] sm:$0xff]
        %v598 = vld [vmem:[%s1 + $0x68] sm:$0xff]
        %v599 = vld [vmem:[%s1 + $0x70] sm:$0xff]
        %v600 = vld [vmem:[%s1 + $0x78] sm:$0xff]
        %v601 = vld [vmem:[%s1 + $0x80] sm:$0xff]
        %v602 = vld [vmem:[%s1 + $0x88] sm:$0xff]
        %v603 = vld [vmem:[%s1 + $0x90] sm:$0xff]
        %v604 = vld [vmem:[%s1 + $0x98] sm:$0xff]
        %v605 = vld [vmem:[%s1 + $0xa0] sm:$0xff]
        %v606 = vld [vmem:[%s1 + $0xa8] sm:$0xff]
        %v607 = vld [vmem:[%s1 + $0xb0] sm:$0xff]
        %v608 = vld [vmem:[%s1 + $0xb8] sm:$0xff]
        %v609 = vld [vmem:[%s1 + $0xc0] sm:$0xff]
        %v610 = vld [vmem:[%s1 + $0xc8] sm:$0xff]
        %v611 = vld [vmem:[%s1 + $0xd0] sm:$0xff]
        %v612 = vld [vmem:[%s1 + $0xd8] sm:$0xff]
        %v613 = vld [vmem:[%s1 + $0xe0] sm:$0xff]
        %v614 = vld [vmem:[%s1 + $0xe8] sm:$0xff]
        %v615 = vld [vmem:[%s1 + $0xf0] sm:$0xff]
        %v616 = vld [vmem:[%s1 + $0xf8] sm:$0xff]
        %v617 = vld [vmem:[%s1 + $0x100] sm:$0xff]
        %v618 = vld [vmem:[%s1 + $0x108] sm:$0xff]
        %v619 = vld [vmem:[%s1 + $0x110] sm:$0xff]
        %v620 = vld [vmem:[%s1 + $0x118] sm:$0xff]
        %v621 = vld [vmem:[%s1 + $0x120] sm:$0xff]
        %v622 = vld [vmem:[%s1 + $0x128] sm:$0xff]
        %v623 = vld [vmem:[%s1 + $0x130] sm:$0xff]
        %v624 = vld [vmem:[%s1 + $0x138] sm:$0xff]
        %s625 = scalar_lea.vmem %s222, 400
        %v626 = vld [vmem:[%s625] sm:$0xff]
        %v627 = vld [vmem:[%s625 + $0x8] sm:$0xff]
        %v628 = vld [vmem:[%s625 + $0x10] sm:$0xff]
        %v629 = vld [vmem:[%s625 + $0x18] sm:$0xff]
        %v630 = vld [vmem:[%s625 + $0x20] sm:$0xff]
        %v631 = vld [vmem:[%s625 + $0x28] sm:$0xff]
        %v632 = vld [vmem:[%s625 + $0x30] sm:$0xff]
        %v633 = vld [vmem:[%s625 + $0x38] sm:$0xff]
        %v634 = vld [vmem:[%s625 + $0x40] sm:$0xff]
        %v635 = vld [vmem:[%s625 + $0x48] sm:$0xff]
        %v636 = vld [vmem:[%s625 + $0x50] sm:$0xff]
        %v637 = vld [vmem:[%s625 + $0x58] sm:$0xff]
        %v638 = vld [vmem:[%s625 + $0x60] sm:$0xff]
        %v639 = vld [vmem:[%s625 + $0x68] sm:$0xff]
        %v640 = vld [vmem:[%s625 + $0x70] sm:$0xff]
        %v641 = vld [vmem:[%s625 + $0x78] sm:$0xff]
        %v642 = vld [vmem:[%s625 + $0x80] sm:$0xff]
        %v643 = vld [vmem:[%s625 + $0x88] sm:$0xff]
        %v644 = vld [vmem:[%s625 + $0x90] sm:$0xff]
        %v645 = vld [vmem:[%s625 + $0x98] sm:$0xff]
        %v646 = vld [vmem:[%s625 + $0xa0] sm:$0xff]
        %v647 = vld [vmem:[%s625 + $0xa8] sm:$0xff]
        %v648 = vld [vmem:[%s625 + $0xb0] sm:$0xff]
        %v649 = vld [vmem:[%s625 + $0xb8] sm:$0xff]
        %v650 = vld [vmem:[%s625 + $0xc0] sm:$0xff]
        %v651 = vld [vmem:[%s625 + $0xc8] sm:$0xff]
        %v652 = vld [vmem:[%s625 + $0xd0] sm:$0xff]
        %v653 = vld [vmem:[%s625 + $0xd8] sm:$0xff]
        %v654 = vld [vmem:[%s625 + $0xe0] sm:$0xff]
        %v655 = vld [vmem:[%s625 + $0xe8] sm:$0xff]
        %v656 = vld [vmem:[%s625 + $0xf0] sm:$0xff]
        %v657 = vld [vmem:[%s625 + $0xf8] sm:$0xff]
        %v658 = vld [vmem:[%s625 + $0x100] sm:$0xff]
        %v659 = vld [vmem:[%s625 + $0x108] sm:$0xff]
        %v660 = vld [vmem:[%s625 + $0x110] sm:$0xff]
        %v661 = vld [vmem:[%s625 + $0x118] sm:$0xff]
        %v662 = vld [vmem:[%s625 + $0x120] sm:$0xff]
        %v663 = vld [vmem:[%s625 + $0x128] sm:$0xff]
        %v664 = vld [vmem:[%s625 + $0x130] sm:$0xff]
        %v665 = vld [vmem:[%s625 + $0x138] sm:$0xff]
        %v666 = vld [vmem:[%s625 + $0x140] sm:$0xff]
        %v667 = vld [vmem:[%s625 + $0x148] sm:$0xff]
        %v668 = vld [vmem:[%s625 + $0x150] sm:$0xff]
        %v669 = vld [vmem:[%s625 + $0x158] sm:$0xff]
        %v670 = vld [vmem:[%s625 + $0x160] sm:$0xff]
        %v671 = vld [vmem:[%s625 + $0x168] sm:$0xff]
        %v672 = vld [vmem:[%s625 + $0x170] sm:$0xff]
        %v673 = vld [vmem:[%s625 + $0x178] sm:$0xff]
        %v674 = vld [vmem:[%s625 + $0x180] sm:$0xff]
        %v675 = vld [vmem:[%s625 + $0x188] sm:$0xff]
        %v677 = vsel %vm313, %v588, 0
        %v680 = vsel %vm313, %v592, 0
        %v683 = vsel %vm313, %v596, 0
        %v686 = vsel %vm313, %v600, 0
        %v689 = vsel %vm313, %v604, 0
        %v692 = vsel %vm313, %v608, 0
        %v695 = vsel %vm313, %v612, 0
        %v698 = vsel %vm313, %v616, 0
        %v701 = vsel %vm313, %v620, 0
        %v704 = vsel %vm313, %v624, 0
        %706 = vmatprep.subr.mxu0 0.0
        %707 = vmatpush1.msra.mxu0 %v626
        %708 = vmatprep.subr.mxu0 0.0
        %709 = vmatpush1.msra.mxu0 %v627
        %710 = vmatprep.subr.mxu0 0.0
        %711 = vmatpush1.msra.mxu0 %v628
        %712 = vmatprep.subr.mxu0 0.0
        %713 = vmatpush1.msra.mxu0 %v629
        %714 = vmatprep.subr.mxu0 0.0
        %715 = vmatpush1.msra.mxu0 %v630
        %716 = vmatprep.subr.mxu0 0.0
        %717 = vmatpush1.msra.mxu0 %v631
        %718 = vmatprep.subr.mxu0 0.0
        %719 = vmatpush1.msra.mxu0 %v632
        %720 = vmatprep.subr.mxu0 0.0
        %721 = vmatpush1.msra.mxu0 %v633
        %722 = vmatprep.subr.mxu0 0.0
        %723 = vmatpush1.msra.mxu0 %v634
        %724 = vmatprep.subr.mxu0 0.0
        %725 = vmatpush1.msra.mxu0 %v635
        %726 = vmatprep.subr.mxu0 0.0
        %727 = vmatpush1.msra.mxu0 %v636
        %728 = vmatprep.subr.mxu0 0.0
        %729 = vmatpush1.msra.mxu0 %v637
        %730 = vmatprep.subr.mxu0 0.0
        %731 = vmatpush1.msra.mxu0 %v638
        %732 = vmatprep.subr.mxu0 0.0
        %733 = vmatpush1.msra.mxu0 %v639
        %734 = vmatprep.subr.mxu0 0.0
        %735 = vmatpush1.msra.mxu0 %v640
        %736 = vmatprep.subr.mxu0 0.0
        %737 = vmatpush1.msra.mxu0 %v641
        %738 = vmatprep.subr.mxu0 0.0
        %739 = vmatpush1.msra.mxu0 %v642
        %740 = vmatprep.subr.mxu0 0.0
        %741 = vmatpush1.msra.mxu0 %v643
        %742 = vmatprep.subr.mxu0 0.0
        %743 = vmatpush1.msra.mxu0 %v644
        %744 = vmatprep.subr.mxu0 0.0
        %745 = vmatpush1.msra.mxu0 %v645
        %746 = vmatprep.subr.mxu0 0.0
        %747 = vmatpush1.msra.mxu0 %v646
        %748 = vmatprep.subr.mxu0 0.0
        %749 = vmatpush1.msra.mxu0 %v647
        %750 = vmatprep.subr.mxu0 0.0
        %751 = vmatpush1.msra.mxu0 %v648
        %752 = vmatprep.subr.mxu0 0.0
        %753 = vmatpush1.msra.mxu0 %v649
        %754 = vmatprep.subr.mxu0 0.0
        %755 = vmatpush1.msra.mxu0 %v650
        %756 = vmatprep.subr.mxu0 0.0
        %757 = vmatpush1.msra.mxu0 %v651
        %758 = vmatprep.subr.mxu0 0.0
        %759 = vmatpush1.msra.mxu0 %v652
        %760 = vmatprep.subr.mxu0 0.0
        %761 = vmatpush1.msra.mxu0 %v653
        %762 = vmatprep.subr.mxu0 0.0
        %763 = vmatpush1.msra.mxu0 %v654
        %764 = vmatprep.subr.mxu0 0.0
        %765 = vmatpush1.msra.mxu0 %v655
        %766 = vmatprep.subr.mxu0 0.0
        %767 = vmatpush1.msra.mxu0 %v656
        %768 = vmatprep.subr.mxu0 0.0
        %769 = vmatpush1.msra.mxu0 %v657
        %770 = vmatprep.mubr.f32.mxu0 %v586
        %771 = vmatmul.mubr.f32.gmra.mrb[0].mxu0 %v585
        %v772 = vpop.f32.mrb[0].mxu0
        %v773 = vadd.f32 0.0, %v772
        %v774 = vpop.f32.mrb[0].mxu0
        %775 = vmatprep.mubr.f32.mxu0 %v590
        %776 = vmatmul.mubr.f32.gmra.mrb[0].mxu0 %v589
        %v777 = vpop.f32.mrb[0].mxu0
        %v778 = vadd.f32 0.0, %v777
        %v779 = vpop.f32.mrb[0].mxu0
        %780 = vmatprep.mubr.f32.mxu0 %v594
        %781 = vmatmul.mubr.f32.gmra.mrb[0].mxu0 %v593
        %v782 = vpop.f32.mrb[0].mxu0
        %v783 = vadd.f32 0.0, %v782
        %v784 = vpop.f32.mrb[0].mxu0
        %785 = vmatprep.mubr.f32.mxu0 %v598
        %786 = vmatmul.mubr.f32.gmra.mrb[0].mxu0 %v597
        %v787 = vpop.f32.mrb[0].mxu0
        %v788 = vadd.f32 0.0, %v787
        %v789 = vpop.f32.mrb[0].mxu0
        %790 = vmatprep.mubr.f32.mxu0 %v602
        %791 = vmatmul.mubr.f32.gmra.mrb[0].mxu0 %v601
        %v792 = vpop.f32.mrb[0].mxu0
        %v793 = vadd.f32 0.0, %v792
        %v794 = vpop.f32.mrb[0].mxu0
        %795 = vmatprep.mubr.f32.mxu0 %v606
        %796 = vmatmul.mubr.f32.gmra.mrb[0].mxu0 %v605
        %v797 = vpop.f32.mrb[0].mxu0
        %v798 = vadd.f32 0.0, %v797
        %v799 = vpop.f32.mrb[0].mxu0
        %800 = vmatprep.mubr.f32.mxu0 %v610
        %801 = vmatmul.mubr.f32.gmra.mrb[0].mxu0 %v609
        %v802 = vpop.f32.mrb[0].mxu0
        %v803 = vadd.f32 0.0, %v802
        %v804 = vpop.f32.mrb[0].mxu0
        %805 = vmatprep.mubr.f32.mxu0 %v614
        %806 = vmatmul.mubr.f32.gmra.mrb[0].mxu0 %v613
        %v807 = vpop.f32.mrb[0].mxu0
        %v808 = vadd.f32 0.0, %v807
        %v809 = vpop.f32.mrb[0].mxu0
        %810 = vmatprep.mubr.f32.mxu0 %v618
        %811 = vmatmul.mubr.f32.gmra.mrb[0].mxu0 %v617
        %v812 = vpop.f32.mrb[0].mxu0
        %v813 = vadd.f32 0.0, %v812
        %v814 = vpop.f32.mrb[0].mxu0
        %815 = vmatprep.mubr.f32.mxu0 %v622
        %816 = vmatmul.mubr.f32.gmra.mrb[0].mxu0 %v621
        %v817 = vpop.f32.mrb[0].mxu0
        %v818 = vadd.f32 0.0, %v817
        %v819 = vpop.f32.mrb[0].mxu0
        %820 = vdwg.mxu0
        %821 = vmatprep.subr.mxu0 0.0
        %822 = vmatpush1.msra.mxu0 %v658
        %823 = vmatprep.subr.mxu0 0.0
        %824 = vmatpush1.msra.mxu0 %v659
        %825 = vmatprep.subr.mxu0 0.0
        %826 = vmatpush1.msra.mxu0 %v660
        %827 = vmatprep.subr.mxu0 0.0
        %828 = vmatpush1.msra.mxu0 %v661
        %829 = vmatprep.subr.mxu0 0.0
        %830 = vmatpush1.msra.mxu0 %v662
        %831 = vmatprep.subr.mxu0 0.0
        %832 = vmatpush1.msra.mxu0 %v663
        %833 = vmatprep.subr.mxu0 0.0
        %834 = vmatpush1.msra.mxu0 %v664
        %835 = vmatprep.subr.mxu0 0.0
        %836 = vmatpush1.msra.mxu0 %v665
        %837 = vmatprep.subr.mxu0 0.0
        %838 = vmatpush1.msra.mxu0 %v666
        %839 = vmatprep.subr.mxu0 0.0
        %840 = vmatpush1.msra.mxu0 %v667
        %841 = vmatprep.subr.mxu0 0.0
        %842 = vmatpush1.msra.mxu0 %v668
        %843 = vmatprep.subr.mxu0 0.0
        %844 = vmatpush1.msra.mxu0 %v669
        %845 = vmatprep.subr.mxu0 0.0
        %846 = vmatpush1.msra.mxu0 %v670
        %847 = vmatprep.subr.mxu0 0.0
        %848 = vmatpush1.msra.mxu0 %v671
        %849 = vmatprep.subr.mxu0 0.0
        %850 = vmatpush1.msra.mxu0 %v672
        %851 = vmatprep.subr.mxu0 0.0
        %852 = vmatpush1.msra.mxu0 %v673
        %853 = vmatprep.subr.mxu0 0.0
        %854 = vmatpush1.msra.mxu0 %v674
        %855 = vmatprep.subr.mxu0 0.0
        %856 = vmatpush1.msra.mxu0 %v675
        %857 = vmatprep.subr.mxu0 0.0
        %858 = vmatpush1.msra.mxu0 0.0
        %859 = vmatprep.subr.mxu0 0.0
        %860 = vmatpush1.msra.mxu0 0.0
        %861 = vmatprep.subr.mxu0 0.0
        %862 = vmatpush1.msra.mxu0 0.0
        %863 = vmatprep.subr.mxu0 0.0
        %864 = vmatpush1.msra.mxu0 0.0
        %865 = vmatprep.subr.mxu0 0.0
        %866 = vmatpush1.msra.mxu0 0.0
        %867 = vmatprep.subr.mxu0 0.0
        %868 = vmatpush1.msra.mxu0 0.0
        %869 = vmatprep.subr.mxu0 0.0
        %870 = vmatpush1.msra.mxu0 0.0
        %871 = vmatprep.subr.mxu0 0.0
        %872 = vmatpush1.msra.mxu0 0.0
        %873 = vmatprep.subr.mxu0 0.0
        %874 = vmatpush1.msra.mxu0 0.0
        %875 = vmatprep.subr.mxu0 0.0
        %876 = vmatpush1.msra.mxu0 0.0
        %877 = vmatprep.subr.mxu0 0.0
        %878 = vmatpush1.msra.mxu0 0.0
        %879 = vmatprep.subr.mxu0 0.0
        %880 = vmatpush1.msra.mxu0 0.0
        %881 = vmatprep.subr.mxu0 0.0
        %882 = vmatpush1.msra.mxu0 0.0
        %883 = vmatprep.subr.mxu0 0.0
        %884 = vmatpush1.msra.mxu0 0.0
        %885 = vmatprep.mubr.f32.mxu0 %v677
        %886 = vmatmul.mubr.f32.gmra.mrb[0].mxu0 %v587
        %v887 = vpop.f32.mrb[0].mxu0
        %v888 = vadd.f32 %v773, %v887
        %v889 = vpop.f32.mrb[0].mxu0
        %890 = vmatprep.mubr.f32.mxu0 %v680
        %891 = vmatmul.mubr.f32.gmra.mrb[0].mxu0 %v591
        %v892 = vpop.f32.mrb[0].mxu0
        %v893 = vadd.f32 %v778, %v892
        %v894 = vpop.f32.mrb[0].mxu0
        %895 = vmatprep.mubr.f32.mxu0 %v683
        %896 = vmatmul.mubr.f32.gmra.mrb[0].mxu0 %v595
        %v897 = vpop.f32.mrb[0].mxu0
        %v898 = vadd.f32 %v783, %v897
        %v899 = vpop.f32.mrb[0].mxu0
        %900 = vmatprep.mubr.f32.mxu0 %v686
        %901 = vmatmul.mubr.f32.gmra.mrb[0].mxu0 %v599
        %v902 = vpop.f32.mrb[0].mxu0
        %v903 = vadd.f32 %v788, %v902
        %v904 = vpop.f32.mrb[0].mxu0
        %905 = vmatprep.mubr.f32.mxu0 %v689
        %906 = vmatmul.mubr.f32.gmra.mrb[0].mxu0 %v603
        %v907 = vpop.f32.mrb[0].mxu0
        %v908 = vadd.f32 %v793, %v907
        %v909 = vpop.f32.mrb[0].mxu0
        %910 = vmatprep.mubr.f32.mxu0 %v692
        %911 = vmatmul.mubr.f32.gmra.mrb[0].mxu0 %v607
        %v912 = vpop.f32.mrb[0].mxu0
        %v913 = vadd.f32 %v798, %v912
        %v914 = vpop.f32.mrb[0].mxu0
        %915 = vmatprep.mubr.f32.mxu0 %v695
        %916 = vmatmul.mubr.f32.gmra.mrb[0].mxu0 %v611
        %v917 = vpop.f32.mrb[0].mxu0
        %v918 = vadd.f32 %v803, %v917
        %v919 = vpop.f32.mrb[0].mxu0
        %920 = vmatprep.mubr.f32.mxu0 %v698
        %921 = vmatmul.mubr.f32.gmra.mrb[0].mxu0 %v615
        %v922 = vpop.f32.mrb[0].mxu0
        %v923 = vadd.f32 %v808, %v922
        %v924 = vpop.f32.mrb[0].mxu0
        %925 = vmatprep.mubr.f32.mxu0 %v701
        %926 = vmatmul.mubr.f32.gmra.mrb[0].mxu0 %v619
        %v927 = vpop.f32.mrb[0].mxu0
        %v928 = vadd.f32 %v813, %v927
        %v929 = vpop.f32.mrb[0].mxu0
        %930 = vmatprep.mubr.f32.mxu0 %v704
        %931 = vmatmul.mubr.f32.gmra.mrb[0].mxu0 %v623
        %v932 = vpop.f32.mrb[0].mxu0
        %v933 = vadd.f32 %v818, %v932
        %v934 = vpop.f32.mrb[0].mxu0
        %935 = vdwg.mxu0
        %936 = vst.msk [vmem:[#allocation2 + $0x50] sm:$0xff] %vm574, %v888
        %937 = vst.msk [vmem:[#allocation2 + $0x58] sm:$0xff] %vm574, %v893
        %938 = vst.msk [vmem:[#allocation2 + $0x60] sm:$0xff] %vm574, %v898
        %939 = vst.msk [vmem:[#allocation2 + $0x68] sm:$0xff] %vm574, %v903
        %940 = vst.msk [vmem:[#allocation2 + $0x70] sm:$0xff] %vm574, %v908
        %941 = vst.msk [vmem:[#allocation2 + $0x78] sm:$0xff] %vm574, %v913
        %942 = vst.msk [vmem:[#allocation2 + $0x80] sm:$0xff] %vm574, %v918
        %943 = vst.msk [vmem:[#allocation2 + $0x88] sm:$0xff] %vm574, %v923
        %944 = vst.msk [vmem:[#allocation2 + $0x90] sm:$0xff] %vm574, %v928
        %945 = vst.msk [vmem:[#allocation2 + $0x98] sm:$0xff] %vm574, %v933
        %v946 = vld [vmem:[#allocation2] sm:$0xff]
        %v947 = vld [vmem:[#allocation2 + $0x8] sm:$0xff]
        %v948 = vld [vmem:[#allocation2 + $0x10] sm:$0xff]
        %v949 = vld [vmem:[#allocation2 + $0x18] sm:$0xff]
        %v950 = vld [vmem:[#allocation2 + $0x20] sm:$0xff]
        %v951 = vld [vmem:[#allocation2 + $0x28] sm:$0xff]
        %v952 = vld [vmem:[#allocation2 + $0x30] sm:$0xff]
        %v953 = vld [vmem:[#allocation2 + $0x38] sm:$0xff]
        %v954 = vld [vmem:[#allocation2 + $0x40] sm:$0xff]
        %v955 = vld [vmem:[#allocation2 + $0x48] sm:$0xff]
        %v956 = vld [vmem:[#allocation2 + $0x50] sm:$0xff]
        %v957 = vld [vmem:[#allocation2 + $0x58] sm:$0xff]
        %v958 = vld [vmem:[#allocation2 + $0x60] sm:$0xff]
        %v959 = vld [vmem:[#allocation2 + $0x68] sm:$0xff]
        %v960 = vld [vmem:[#allocation2 + $0x70] sm:$0xff]
        %v961 = vld [vmem:[#allocation2 + $0x78] sm:$0xff]
        %v962 = vld [vmem:[#allocation2 + $0x80] sm:$0xff]
        %v963 = vld [vmem:[#allocation2 + $0x88] sm:$0xff]
        %v964 = vld [vmem:[#allocation2 + $0x90] sm:$0xff]
        %v965 = vld [vmem:[#allocation2 + $0x98] sm:$0xff]
        %v966 = vld [vmem:[%s2] sm:$0xff]
        %v967 = vld [vmem:[%s2 + $0x8] sm:$0xf]
        %p968 = scmp.eq.s32.totalorder %s19, 0
        %v969 = vld [vmem:[%s3] sm:$0xff]
        %v970 = vld [vmem:[%s3 + $0x8] sm:$0xf]
        %s971 = scalar_select %p968, 1, 0
        %v972 = vstv %s971
        %vm973 = vcmp.eq.s32.totalorder %v972, 1
        %v974 = vsel %vm973, %v969, %v966
        %v975 = vsel %vm973, %v970, %v967
        %p976 = scmp.eq.s32.totalorder %s19, 1
        %v977 = vld [vmem:[%s4] sm:$0xff]
        %v978 = vld [vmem:[%s4 + $0x8] sm:$0xf]
        %s979 = scalar_select %p976, 1, 0
        %v980 = vstv %s979
        %vm981 = vcmp.eq.s32.totalorder %v980, 1
        %v982 = vsel %vm981, %v977, %v974
        %v983 = vsel %vm981, %v978, %v975
        %v985 = vsel %vm574, %v946, 0
        %v988 = vsel %vm574, %v947, 0
        %v991 = vsel %vm574, %v948, 0
        %v994 = vsel %vm574, %v949, 0
        %v997 = vsel %vm574, %v950, 0
        %v1000 = vsel %vm574, %v951, 0
        %v1003 = vsel %vm574, %v952, 0
        %v1006 = vsel %vm574, %v953, 0
        %v1009 = vsel %vm574, %v954, 0
        %v1012 = vsel %vm574, %v955, 0
        %v1015 = vsel %vm574, %v956, 0
        %v1018 = vsel %vm574, %v957, 0
        %v1021 = vsel %vm574, %v958, 0
        %v1024 = vsel %vm574, %v959, 0
        %v1027 = vsel %vm574, %v960, 0
        %v1030 = vsel %vm574, %v961, 0
        %v1033 = vsel %vm574, %v962, 0
        %v1036 = vsel %vm574, %v963, 0
        %v1039 = vsel %vm574, %v964, 0
        %v1042 = vsel %vm574, %v965, 0
        %vm1044 = vcmask 1043456
        %v1046 = vsel %vm1044, %v983, 0
        %1048 = vmatprep.subr.mxu0 0.0
        %1049 = vmatpush1.msra.mxu0 %v982
        %1050 = vmatprep.subr.mxu0 0.0
        %1051 = vmatpush1.msra.mxu0 %v1046
        %1052 = vmatprep.subr.mxu0 0.0
        %1053 = vmatpush1.msra.mxu0 0.0
        %1054 = vmatprep.subr.mxu0 0.0
        %1055 = vmatpush1.msra.mxu0 0.0
        %1056 = vmatprep.subr.mxu0 0.0
        %1057 = vmatpush1.msra.mxu0 0.0
        %1058 = vmatprep.subr.mxu0 0.0
        %1059 = vmatpush1.msra.mxu0 0.0
        %1060 = vmatprep.subr.mxu0 0.0
        %1061 = vmatpush1.msra.mxu0 0.0
        %1062 = vmatprep.subr.mxu0 0.0
        %1063 = vmatpush1.msra.mxu0 0.0
        %1064 = vmatprep.subr.mxu0 0.0
        %1065 = vmatpush1.msra.mxu0 0.0
        %1066 = vmatprep.subr.mxu0 0.0
        %1067 = vmatpush1.msra.mxu0 0.0
        %1068 = vmatprep.subr.mxu0 0.0
        %1069 = vmatpush1.msra.mxu0 0.0
        %1070 = vmatprep.subr.mxu0 0.0
        %1071 = vmatpush1.msra.mxu0 0.0
        %1072 = vmatprep.subr.mxu0 0.0
        %1073 = vmatpush1.msra.mxu0 0.0
        %1074 = vmatprep.subr.mxu0 0.0
        %1075 = vmatpush1.msra.mxu0 0.0
        %1076 = vmatprep.subr.mxu0 0.0
        %1077 = vmatpush1.msra.mxu0 0.0
        %1078 = vmatprep.subr.mxu0 0.0
        %1079 = vmatpush1.msra.mxu0 0.0
        %1080 = vmatprep.subr.mxu0 0.0
        %1081 = vmatpush1.msra.mxu0 0.0
        %1082 = vmatprep.subr.mxu0 0.0
        %1083 = vmatpush1.msra.mxu0 0.0
        %1084 = vmatprep.subr.mxu0 0.0
        %1085 = vmatpush1.msra.mxu0 0.0
        %1086 = vmatprep.subr.mxu0 0.0
        %1087 = vmatpush1.msra.mxu0 0.0
        %1088 = vmatprep.subr.mxu0 0.0
        %1089 = vmatpush1.msra.mxu0 0.0
        %1090 = vmatprep.subr.mxu0 0.0
        %1091 = vmatpush1.msra.mxu0 0.0
        %1092 = vmatprep.subr.mxu0 0.0
        %1093 = vmatpush1.msra.mxu0 0.0
        %1094 = vmatprep.subr.mxu0 0.0
        %1095 = vmatpush1.msra.mxu0 0.0
        %1096 = vmatprep.subr.mxu0 0.0
        %1097 = vmatpush1.msra.mxu0 0.0
        %1098 = vmatprep.subr.mxu0 0.0
        %1099 = vmatpush1.msra.mxu0 0.0
        %1100 = vmatprep.subr.mxu0 0.0
        %1101 = vmatpush1.msra.mxu0 0.0
        %1102 = vmatprep.subr.mxu0 0.0
        %1103 = vmatpush1.msra.mxu0 0.0
        %1104 = vmatprep.subr.mxu0 0.0
        %1105 = vmatpush1.msra.mxu0 0.0
        %1106 = vmatprep.subr.mxu0 0.0
        %1107 = vmatpush1.msra.mxu0 0.0
        %1108 = vmatprep.subr.mxu0 0.0
        %1109 = vmatpush1.msra.mxu0 0.0
        %1110 = vmatprep.subr.mxu0 0.0
        %1111 = vmatpush1.msra.mxu0 0.0
        %1112 = vmatprep.mubr.f32.mxu0 0.0
        %1113 = vmatmul.mubr.f32.gmra.mrb[0].mxu0 %v985
        %v1114 = vpop.f32.mrb[0].mxu0
        %v1115 = vadd.f32 0.0, %v1114
        %v1116 = vpop.f32.mrb[0].mxu0
        %1117 = vmatprep.mubr.f32.mxu0 0.0
        %1118 = vmatmul.mubr.f32.gmra.mrb[0].mxu0 %v988
        %v1119 = vpop.f32.mrb[0].mxu0
        %v1120 = vadd.f32 0.0, %v1119
        %v1121 = vpop.f32.mrb[0].mxu0
        %1122 = vmatprep.mubr.f32.mxu0 0.0
        %1123 = vmatmul.mubr.f32.gmra.mrb[0].mxu0 %v991
        %v1124 = vpop.f32.mrb[0].mxu0
        %v1125 = vadd.f32 0.0, %v1124
        %v1126 = vpop.f32.mrb[0].mxu0
        %1127 = vmatprep.mubr.f32.mxu0 0.0
        %1128 = vmatmul.mubr.f32.gmra.mrb[0].mxu0 %v994
        %v1129 = vpop.f32.mrb[0].mxu0
        %v1130 = vadd.f32 0.0, %v1129
        %v1131 = vpop.f32.mrb[0].mxu0
        %1132 = vmatprep.mubr.f32.mxu0 0.0
        %1133 = vmatmul.mubr.f32.gmra.mrb[0].mxu0 %v997
        %v1134 = vpop.f32.mrb[0].mxu0
        %v1135 = vadd.f32 0.0, %v1134
        %v1136 = vpop.f32.mrb[0].mxu0
        %1137 = vmatprep.mubr.f32.mxu0 0.0
        %1138 = vmatmul.mubr.f32.gmra.mrb[0].mxu0 %v1000
        %v1139 = vpop.f32.mrb[0].mxu0
        %v1140 = vadd.f32 0.0, %v1139
        %v1141 = vpop.f32.mrb[0].mxu0
        %1142 = vmatprep.mubr.f32.mxu0 0.0
        %1143 = vmatmul.mubr.f32.gmra.mrb[0].mxu0 %v1003
        %v1144 = vpop.f32.mrb[0].mxu0
        %v1145 = vadd.f32 0.0, %v1144
        %v1146 = vpop.f32.mrb[0].mxu0
        %1147 = vmatprep.mubr.f32.mxu0 0.0
        %1148 = vmatmul.mubr.f32.gmra.mrb[0].mxu0 %v1006
        %v1149 = vpop.f32.mrb[0].mxu0
        %v1150 = vadd.f32 0.0, %v1149
        %v1151 = vpop.f32.mrb[0].mxu0
        %1152 = vmatprep.mubr.f32.mxu0 0.0
        %1153 = vmatmul.mubr.f32.gmra.mrb[0].mxu0 %v1009
        %v1154 = vpop.f32.mrb[0].mxu0
        %v1155 = vadd.f32 0.0, %v1154
        %v1156 = vpop.f32.mrb[0].mxu0
        %1157 = vmatprep.mubr.f32.mxu0 0.0
        %1158 = vmatmul.mubr.f32.gmra.mrb[0].mxu0 %v1012
        %v1159 = vpop.f32.mrb[0].mxu0
        %v1160 = vadd.f32 0.0, %v1159
        %v1161 = vpop.f32.mrb[0].mxu0
        %1162 = vmatprep.mubr.f32.mxu0 0.0
        %1163 = vmatmul.mubr.f32.gmra.mrb[0].mxu0 %v1015
        %v1164 = vpop.f32.mrb[0].mxu0
        %v1165 = vadd.f32 0.0, %v1164
        %v1166 = vpop.f32.mrb[0].mxu0
        %1167 = vmatprep.mubr.f32.mxu0 0.0
        %1168 = vmatmul.mubr.f32.gmra.mrb[0].mxu0 %v1018
        %v1169 = vpop.f32.mrb[0].mxu0
        %v1170 = vadd.f32 0.0, %v1169
        %v1171 = vpop.f32.mrb[0].mxu0
        %1172 = vmatprep.mubr.f32.mxu0 0.0
        %1173 = vmatmul.mubr.f32.gmra.mrb[0].mxu0 %v1021
        %v1174 = vpop.f32.mrb[0].mxu0
        %v1175 = vadd.f32 0.0, %v1174
        %v1176 = vpop.f32.mrb[0].mxu0
        %1177 = vmatprep.mubr.f32.mxu0 0.0
        %1178 = vmatmul.mubr.f32.gmra.mrb[0].mxu0 %v1024
        %v1179 = vpop.f32.mrb[0].mxu0
        %v1180 = vadd.f32 0.0, %v1179
        %v1181 = vpop.f32.mrb[0].mxu0
        %1182 = vmatprep.mubr.f32.mxu0 0.0
        %1183 = vmatmul.mubr.f32.gmra.mrb[0].mxu0 %v1027
        %v1184 = vpop.f32.mrb[0].mxu0
        %v1185 = vadd.f32 0.0, %v1184
        %v1186 = vpop.f32.mrb[0].mxu0
        %1187 = vmatprep.mubr.f32.mxu0 0.0
        %1188 = vmatmul.mubr.f32.gmra.mrb[0].mxu0 %v1030
        %v1189 = vpop.f32.mrb[0].mxu0
        %v1190 = vadd.f32 0.0, %v1189
        %v1191 = vpop.f32.mrb[0].mxu0
        %1192 = vmatprep.mubr.f32.mxu0 0.0
        %1193 = vmatmul.mubr.f32.gmra.mrb[0].mxu0 %v1033
        %v1194 = vpop.f32.mrb[0].mxu0
        %v1195 = vadd.f32 0.0, %v1194
        %v1196 = vpop.f32.mrb[0].mxu0
        %1197 = vmatprep.mubr.f32.mxu0 0.0
        %1198 = vmatmul.mubr.f32.gmra.mrb[0].mxu0 %v1036
        %v1199 = vpop.f32.mrb[0].mxu0
        %v1200 = vadd.f32 0.0, %v1199
        %v1201 = vpop.f32.mrb[0].mxu0
        %1202 = vmatprep.mubr.f32.mxu0 0.0
        %1203 = vmatmul.mubr.f32.gmra.mrb[0].mxu0 %v1039
        %v1204 = vpop.f32.mrb[0].mxu0
        %v1205 = vadd.f32 0.0, %v1204
        %v1206 = vpop.f32.mrb[0].mxu0
        %1207 = vmatprep.mubr.f32.mxu0 0.0
        %1208 = vmatmul.mubr.f32.gmra.mrb[0].mxu0 %v1042
        %v1209 = vpop.f32.mrb[0].mxu0
        %v1210 = vadd.f32 0.0, %v1209
        %v1211 = vpop.f32.mrb[0].mxu0
        %1212 = vdwg.mxu0
        %1213 = vst [vmem:[%s217] sm:$0xff] %v1115
        %1214 = vst [vmem:[%s217 + $0x8] sm:$0xff] %v1120
        %1215 = vst [vmem:[%s217 + $0x10] sm:$0xff] %v1125
        %1216 = vst [vmem:[%s217 + $0x18] sm:$0xff] %v1130
        %1217 = vst [vmem:[%s217 + $0x20] sm:$0xff] %v1135
        %1218 = vst [vmem:[%s217 + $0x28] sm:$0xff] %v1140
        %1219 = vst [vmem:[%s217 + $0x30] sm:$0xff] %v1145
        %1220 = vst [vmem:[%s217 + $0x38] sm:$0xff] %v1150
        %1221 = vst [vmem:[%s217 + $0x40] sm:$0xff] %v1155
        %1222 = vst [vmem:[%s217 + $0x48] sm:$0xff] %v1160
        %1223 = vst [vmem:[%s217 + $0x50] sm:$0xff] %v1165
        %1224 = vst [vmem:[%s217 + $0x58] sm:$0xff] %v1170
        %1225 = vst [vmem:[%s217 + $0x60] sm:$0xff] %v1175
        %1226 = vst [vmem:[%s217 + $0x68] sm:$0xff] %v1180
        %1227 = vst [vmem:[%s217 + $0x70] sm:$0xff] %v1185
        %1228 = vst [vmem:[%s217 + $0x78] sm:$0xff] %v1190
        %1229 = vst [vmem:[%s217 + $0x80] sm:$0xff] %v1195
        %1230 = vst [vmem:[%s217 + $0x88] sm:$0xff] %v1200
        %1231 = vst [vmem:[%s217 + $0x90] sm:$0xff] %v1205
        %1232 = vst [vmem:[%s217 + $0x98] sm:$0xff] %v1210
        %s1233 = sand.u32 %s137, 1
        %s1234 = scalar_lea.sflag [#allocation4], %s1233
        %s1235 = sand.u32 %s137, 1
        %s1236 = smul.addr %s1235, 160
        %s1237 = scalar_lea.vmem [#allocation3], %s1236
        // Predicated region
        $region41: #{tpu_custom_call.1} parent=39 // pred_check
          %p1238 = pneg %p147
        $region42: #{tpu_custom_call.1} parent=39 // pred_check_branch
          %1240 = sbr.rel (%p1238) target = $region44
        $region43: #{tpu_custom_call.1} parent=39 // pred_region
          %s1242 = ssub.s32 2560, 2560
          %1243 = vsyncadd %s1234, %s1242
          %s1244 = smul.addr %s19, 128
          %s1245 = scalar_lea.hbm %s5, %s1244
          %s1246 = sshll.u32 %s1237, 4
          %s1247 = int_to_ptr.vmem [resolvable:$true] %s1246
          %1252 = dma.vmem_to_hbm [thread:$0]  %s1247, 2560, %s1245, %s1234, 128, 256, 8
        $region44: #{tpu_custom_call.1} parent=39 // pred_fallthru
          _
      $region40: #{tpu_custom_call.1} parent=5 // pred_fallthru
        _
      %p1253 = scmp.le.s32.totalorder 2, %s14
      // Predicated region
      $region45: #{tpu_custom_call.1} parent=5 // pred_check
        %p1254 = pneg %p1253
      $region46: #{tpu_custom_call.1} parent=5 // pred_check_branch
        %1256 = sbr.rel (%p1254) target = $region48
      $region47: #{tpu_custom_call.1} parent=5 // pred_region
        %s1257 = ssub.s32 %s14, 2
        // Predicated region
        $region49: #{tpu_custom_call.1} parent=47 // pred_check
          %p1258 = pneg %p153
        $region50: #{tpu_custom_call.1} parent=47 // pred_check_branch
          %1260 = sbr.rel (%p1258) target = $region52
        $region51: #{tpu_custom_call.1} parent=47 // pred_region
          %s1261 = sand.u32 %s138, 1
          %s1262 = scalar_lea.sflag [#allocation4], %s1261
          %s1263 = sand.u32 %s138, 1
          %s1264 = smul.addr %s1263, 160
          %s1265 = scalar_lea.vmem [#allocation3], %s1264
          %1266 = dma.done %s1262, 2560
        $region52: #{tpu_custom_call.1} parent=47 // pred_fallthru
          _
      $region48: #{tpu_custom_call.1} parent=5 // pred_fallthru
        _
    $region6: #{tpu_custom_call.1} parent=1 // loop_footer
      %s18 = sadd.s32 1, %s14
    $region7: #{tpu_custom_call.1} parent=1 // loop_footer_branch
      %13 = sbr.rel target = $region3
    $region8: #{tpu_custom_call.1} parent=1 // loop_exit
      _
    %1267 = vsyncpa [#allocation4], 1
    %s1268 = scalar_lea.sflag [#allocation4], 1
    %1269 = vsyncpa %s1268, 1

// kernel: tpu_custom_call.1
$region0: #{tpu_custom_call.1}
  #allocation0 [shape = 'u32[]', space=smem, size = 0x4, offset = 0x4, fixed_abs, tag = 'smem constant byte address 0x4 - core index']
  #allocation1 [shape = 'u32[144,128]{1,0:T(1,128)}', space=vmem, size = 0x12000, scoped, tag = 'internal scratch']
  #allocation2 [shape = 'f32[160,12]{1,0:T(8,128)}', space=vmem, size = 0x14000, scoped, tag = 'scratch operand']
  %s0 = inlined_call_operand.vmem [shape: f32[2,2,400,12], index: 0, kind: input, shape index: {}]
  %s1 = inlined_call_operand.vmem [shape: f32[80,400], index: 1, kind: input, shape index: {}]
  %s2 = inlined_call_operand.vmem [shape: f32[12,128], index: 2, kind: input, shape index: {}]
  %s3 = inlined_call_operand.vmem [shape: f32[12,128], index: 3, kind: input, shape index: {}]
  %s4 = inlined_call_operand.vmem [shape: f32[12,128], index: 4, kind: input, shape index: {}]
  %s5 = inlined_call_operand.hbm [shape: f32[160,256], index: 5, kind: output, shape index: {}]
  %s6 = sld [smem:[#allocation0]]
  $region53: #{tpu_custom_call.1} parent=0
    _
  %s8 = ssub.s32 1, %s6
  %s9 = scalar_select 0, %s8, %s6
  $region1: #{tpu_custom_call.1} parent=0
    #allocation3 [shape = 'u8[163840]{0}', space=vmem, size = 0x28000, scoped, tag = 'output window, operand 0']
    #allocation4 [shape = 's32[2]{0}', space=sflag, size = 0x8, scoped, tag = 'scoped memory for tpu_custom_call.1']
    %10 = vsyncpa [#allocation4], 0
    %s11 = scalar_lea.sflag [#allocation4], 1
    %12 = vsyncpa %s11, 0
    loop: start=0, step=1, limit=4
    $region2: #{tpu_custom_call.1} parent=1 // loop_pre_header
      _
    $region3: #{tpu_custom_call.1} parent=1 // loop_header
      %s14 = sphi 0, %s18
      %p15 = scmp.ge.s32.totalorder %s14, 4
      %s24 = sphi 0, %s26
      %s27 = sphi 0, %s24
      %s28 = sphi 0, %s27
      %s44 = sphi 0, %s28
      %s48 = sphi 0, %s48
      %s50 = sphi 0, %s48
      %s51 = sphi 0, %s50
      %s65 = sphi 0, %s51
      %s69 = sphi 0, %s69
      %s71 = sphi 0, %s69
      %s72 = sphi 0, %s71
      %s86 = sphi 0, %s72
      %s90 = sphi 0, %s90
      %s92 = sphi 0, %s90
      %s93 = sphi 0, %s92
      %s107 = sphi 0, %s93
      %s111 = sphi 0, %s111
      %s113 = sphi 0, %s111
      %s114 = sphi 0, %s113
      %s128 = sphi 0, %s114
      %s134 = sphi 0, %s136
      %s137 = sphi 0, %s134
      %s138 = sphi 0, %s137
      %s154 = sphi 0, %s138
    $region4: #{tpu_custom_call.1} parent=1 // loop_header_branch
      %17 = sbr.rel (%p15) target = $region8
    $region5: #{tpu_custom_call.1} parent=1 // loop_body
      %s19 = ssub.s32 %s14, 1
      %s20 = ssub.s32 %s14, 2
      %s21 = sadd.s32 %s14, 1
      %s22 = ssub.s32 %s14, %s21
      %p23 = scmp.eq.s32.totalorder %s22, 0
      %s25 = sadd.s32 %s24, 1
      %s26 = scalar_select %p23, %s24, %s25
      %p29 = pneg %p23
      %p30 = scmp.eq.s32.totalorder %s14, 1
      %p31 = por %p29, %p30
      %p32 = scmp.ne.s32.totalorder %s24, %s27
      %p33 = scmp.eq.s32.totalorder %s14, 0
      %p34 = por %p32, %p33
      %p35 = scmp.ne.s32.totalorder %s24, %s27
      %p36 = scmp.eq.s32.totalorder %s19, 1
      %p37 = por %p35, %p36
      %p38 = scmp.ne.s32.totalorder %s27, %s28
      %p39 = scmp.eq.s32.totalorder %s19, 0
      %p40 = por %p38, %p39
      %p41 = scmp.ne.s32.totalorder %s27, %s28
      %p42 = scmp.eq.s32.totalorder %s20, 1
      %p43 = por %p41, %p42
      %p45 = scmp.ne.s32.totalorder %s28, %s44
      %p46 = scmp.eq.s32.totalorder %s20, 0
      %p47 = por %p45, %p46
      %s49 = sadd.s32 %s48, 1
      %p52 = scmp.eq.s32.totalorder %s14, 1
      %p53 = scmp.ne.s32.totalorder %s48, %s50
      %p54 = scmp.eq.s32.totalorder %s14, 0
      %p55 = por %p53, %p54
      %p56 = scmp.ne.s32.totalorder %s48, %s50
      %p57 = scmp.eq.s32.totalorder %s19, 1
      %p58 = por %p56, %p57
      %p59 = scmp.ne.s32.totalorder %s50, %s51
      %p60 = scmp.eq.s32.totalorder %s19, 0
      %p61 = por %p59, %p60
      %p62 = scmp.ne.s32.totalorder %s50, %s51
      %p63 = scmp.eq.s32.totalorder %s20, 1
      %p64 = por %p62, %p63
      %p66 = scmp.ne.s32.totalorder %s51, %s65
      %p67 = scmp.eq.s32.totalorder %s20, 0
      %p68 = por %p66, %p67
      %s70 = sadd.s32 %s69, 1
      %p73 = scmp.eq.s32.totalorder %s14, 1
      %p74 = scmp.ne.s32.totalorder %s69, %s71
      %p75 = scmp.eq.s32.totalorder %s14, 0
      %p76 = por %p74, %p75
      %p77 = scmp.ne.s32.totalorder %s69, %s71
      %p78 = scmp.eq.s32.totalorder %s19, 1
      %p79 = por %p77, %p78
      %p80 = scmp.ne.s32.totalorder %s71, %s72
      %p81 = scmp.eq.s32.totalorder %s19, 0
      %p82 = por %p80, %p81
      %p83 = scmp.ne.s32.totalorder %s71, %s72
      %p84 = scmp.eq.s32.totalorder %s20, 1
      %p85 = por %p83, %p84
      %p87 = scmp.ne.s32.totalorder %s72, %s86
      %p88 = scmp.eq.s32.totalorder %s20, 0
      %p89 = por %p87, %p88
      %s91 = sadd.s32 %s90, 1
      %p94 = scmp.eq.s32.totalorder %s14, 1
      %p95 = scmp.ne.s32.totalorder %s90, %s92
      %p96 = scmp.eq.s32.totalorder %s14, 0
      %p97 = por %p95, %p96
      %p98 = scmp.ne.s32.totalorder %s90, %s92
      %p99 = scmp.eq.s32.totalorder %s19, 1
      %p100 = por %p98, %p99
      %p101 = scmp.ne.s32.totalorder %s92, %s93
      %p102 = scmp.eq.s32.totalorder %s19, 0
      %p103 = por %p101, %p102
      %p104 = scmp.ne.s32.totalorder %s92, %s93
      %p105 = scmp.eq.s32.totalorder %s20, 1
      %p106 = por %p104, %p105
      %p108 = scmp.ne.s32.totalorder %s93, %s107
      %p109 = scmp.eq.s32.totalorder %s20, 0
      %p110 = por %p108, %p109
      %s112 = sadd.s32 %s111, 1
      %p115 = scmp.eq.s32.totalorder %s14, 1
      %p116 = scmp.ne.s32.totalorder %s111, %s113
      %p117 = scmp.eq.s32.totalorder %s14, 0
      %p118 = por %p116, %p117
      %p119 = scmp.ne.s32.totalorder %s111, %s113
      %p120 = scmp.eq.s32.totalorder %s19, 1
      %p121 = por %p119, %p120
      %p122 = scmp.ne.s32.totalorder %s113, %s114
      %p123 = scmp.eq.s32.totalorder %s19, 0
      %p124 = por %p122, %p123
      %p125 = scmp.ne.s32.totalorder %s113, %s114
      %p126 = scmp.eq.s32.totalorder %s20, 1
      %p127 = por %p125, %p126
      %p129 = scmp.ne.s32.totalorder %s114, %s128
      %p130 = scmp.eq.s32.totalorder %s20, 0
      %p131 = por %p129, %p130
      %s132 = ssub.s32 %s14, %s21
      %p133 = scmp.eq.s32.totalorder %s132, 0
      %s135 = sadd.s32 %s134, 1
      %s136 = scalar_select %p133, %s134, %s135
      %p139 = pneg %p133
      %p140 = scmp.eq.s32.totalorder %s14, 1
      %p141 = por %p139, %p140
      %p142 = scmp.ne.s32.totalorder %s134, %s137
      %p143 = scmp.eq.s32.totalorder %s14, 0
      %p144 = por %p142, %p143
      %p145 = scmp.ne.s32.totalorder %s134, %s137
      %p146 = scmp.eq.s32.totalorder %s19, 1
      %p147 = por %p145, %p146
      %p148 = scmp.ne.s32.totalorder %s137, %s138
      %p149 = scmp.eq.s32.totalorder %s19, 0
      %p150 = por %p148, %p149
      %p151 = scmp.ne.s32.totalorder %s137, %s138
      %p152 = scmp.eq.s32.totalorder %s20, 1
      %p153 = por %p151, %p152
      %p155 = scmp.ne.s32.totalorder %s138, %s154
      %p156 = scmp.eq.s32.totalorder %s20, 0
      %p157 = por %p155, %p156
      %p158 = scmp.le.s32.totalorder 1, %s14
      %p159 = scmp.lt.s32.totalorder %s14, 3
      %p160 = pnand %p158, %p159
      %p161 = pneg %p160
      // Predicated region
      $region9: #{tpu_custom_call.1} parent=5 // pred_check
        _
      $region10: #{tpu_custom_call.1} parent=5 // pred_check_branch
        %163 = sbr.rel (%p160) target = $region12
      $region11: #{tpu_custom_call.1} parent=5 // pred_region
        %s164 = ssub.s32 %s14, 1
        // Predicated region
        $region13: #{tpu_custom_call.1} parent=11 // pred_check
          %p165 = pneg %p61
        $region14: #{tpu_custom_call.1} parent=11 // pred_check_branch
          %167 = sbr.rel (%p165) target = $region16
        $region15: #{tpu_custom_call.1} parent=11 // pred_region
          _
        $region16: #{tpu_custom_call.1} parent=11 // pred_fallthru
          _
        // Predicated region
        $region17: #{tpu_custom_call.1} parent=11 // pred_check
          %p168 = pneg %p82
        $region18: #{tpu_custom_call.1} parent=11 // pred_check_branch
          %170 = sbr.rel (%p168) target = $region20
        $region19: #{tpu_custom_call.1} parent=11 // pred_region
          _
        $region20: #{tpu_custom_call.1} parent=11 // pred_fallthru
          _
        // Predicated region
        $region21: #{tpu_custom_call.1} parent=11 // pred_check
          %p171 = pneg %p103
        $region22: #{tpu_custom_call.1} parent=11 // pred_check_branch
          %173 = sbr.rel (%p171) target = $region24
        $region23: #{tpu_custom_call.1} parent=11 // pred_region
          _
        $region24: #{tpu_custom_call.1} parent=11 // pred_fallthru
          _
        // Predicated region
        $region25: #{tpu_custom_call.1} parent=11 // pred_check
          %p174 = pneg %p124
        $region26: #{tpu_custom_call.1} parent=11 // pred_check_branch
          %176 = sbr.rel (%p174) target = $region28
        $region27: #{tpu_custom_call.1} parent=11 // pred_region
          _
        $region28: #{tpu_custom_call.1} parent=11 // pred_fallthru
          _
      $region12: #{tpu_custom_call.1} parent=5 // pred_fallthru
        _
      %p177 = scmp.lt.s32.totalorder %s14, 2
      // Predicated region
      $region29: #{tpu_custom_call.1} parent=5 // pred_check
        %p178 = pneg %p177
      $region30: #{tpu_custom_call.1} parent=5 // pred_check_branch
        %180 = sbr.rel (%p178) target = $region32
      $region31: #{tpu_custom_call.1} parent=5 // pred_region
        // Predicated region
        $region33: #{tpu_custom_call.1} parent=31 // pred_check
          %p181 = pneg %p34
        $region34: #{tpu_custom_call.1} parent=31 // pred_check_branch
          %183 = sbr.rel (%p181) target = $region36
        $region35: #{tpu_custom_call.1} parent=31 // pred_region
          %p184 = scmp.lt.s32.totalorder %s14, 1
          %s185 = scalar_select %p184, %s14, 1
          %s186 = smul.addr %s185, 100
          %s187 = smul.addr %s186, 8
          %s188 = scalar_lea.vmem %s0, %s187
        $region36: #{tpu_custom_call.1} parent=31 // pred_fallthru
          _
      $region32: #{tpu_custom_call.1} parent=5 // pred_fallthru
        _
      %p189 = scmp.le.s32.totalorder 1, %s14
      %p190 = scmp.lt.s32.totalorder %s14, 3
      %p191 = pnand %p189, %p190
      %p192 = pneg %p191
      // Predicated region
      $region37: #{tpu_custom_call.1} parent=5 // pred_check
        _
      $region38: #{tpu_custom_call.1} parent=5 // pred_check_branch
        %194 = sbr.rel (%p191) target = $region40
      $region39: #{tpu_custom_call.1} parent=5 // pred_region
        %s195 = ssub.s32 %s14, 1
        %p196 = scmp.lt.s32.totalorder %s19, 1
        %s197 = scalar_select %p196, %s19, 1
        %s198 = smul.addr %s197, 100
        %s199 = smul.addr %s198, 8
        %s200 = scalar_lea.vmem %s0, %s199
        %p201 = pneg %p40
        %p202 = pneg %p37
        %p203 = pneg %p61
        %p204 = pneg %p58
        %p205 = pneg %p82
        %p206 = pneg %p79
        %p207 = pneg %p103
        %p208 = pneg %p100
        %p209 = pneg %p124
        %p210 = pneg %p121
        %p211 = pneg %p150
        %p212 = pneg %p147
        %s213 = sand.u32 %s137, 1
        %s214 = scalar_lea.sflag [#allocation4], %s213
        %s215 = sand.u32 %s137, 1
        %s216 = smul.addr %s215, 160
        %s217 = scalar_lea.vmem [#allocation3], %s216
        %p218 = scmp.lt.s32.totalorder %s19, 1
        %s219 = scalar_select %p218, %s19, 1
        %s220 = smul.addr %s219, 100
        %s221 = smul.addr %s220, 8
        %s222 = scalar_lea.vmem %s0, %s221
        %v223 = vld [vmem:[%s1] sm:$0xff]
        %v224 = vld [vmem:[%s1 + $0x8] sm:$0xff]
        %v225 = vld [vmem:[%s1 + $0x10] sm:$0xff]
        %v226 = vld [vmem:[%s1 + $0x18] sm:$0xff]
        %v227 = vld [vmem:[%s1 + $0x20] sm:$0xff]
        %v228 = vld [vmem:[%s1 + $0x28] sm:$0xff]
        %v229 = vld [vmem:[%s1 + $0x30] sm:$0xff]
        %v230 = vld [vmem:[%s1 + $0x38] sm:$0xff]
        %v231 = vld [vmem:[%s1 + $0x40] sm:$0xff]
        %v232 = vld [vmem:[%s1 + $0x48] sm:$0xff]
        %v233 = vld [vmem:[%s1 + $0x50] sm:$0xff]
        %v234 = vld [vmem:[%s1 + $0x58] sm:$0xff]
        %v235 = vld [vmem:[%s1 + $0x60] sm:$0xff]
        %v236 = vld [vmem:[%s1 + $0x68] sm:$0xff]
        %v237 = vld [vmem:[%s1 + $0x70] sm:$0xff]
        %v238 = vld [vmem:[%s1 + $0x78] sm:$0xff]
        %v239 = vld [vmem:[%s1 + $0x80] sm:$0xff]
        %v240 = vld [vmem:[%s1 + $0x88] sm:$0xff]
        %v241 = vld [vmem:[%s1 + $0x90] sm:$0xff]
        %v242 = vld [vmem:[%s1 + $0x98] sm:$0xff]
        %v243 = vld [vmem:[%s1 + $0xa0] sm:$0xff]
        %v244 = vld [vmem:[%s1 + $0xa8] sm:$0xff]
        %v245 = vld [vmem:[%s1 + $0xb0] sm:$0xff]
        %v246 = vld [vmem:[%s1 + $0xb8] sm:$0xff]
        %v247 = vld [vmem:[%s1 + $0xc0] sm:$0xff]
        %v248 = vld [vmem:[%s1 + $0xc8] sm:$0xff]
        %v249 = vld [vmem:[%s1 + $0xd0] sm:$0xff]
        %v250 = vld [vmem:[%s1 + $0xd8] sm:$0xff]
        %v251 = vld [vmem:[%s1 + $0xe0] sm:$0xff]
        %v252 = vld [vmem:[%s1 + $0xe8] sm:$0xff]
        %v253 = vld [vmem:[%s1 + $0xf0] sm:$0xff]
        %v254 = vld [vmem:[%s1 + $0xf8] sm:$0xff]
        %v255 = vld [vmem:[%s1 + $0x100] sm:$0xff]
        %v256 = vld [vmem:[%s1 + $0x108] sm:$0xff]
        %v257 = vld [vmem:[%s1 + $0x110] sm:$0xff]
        %v258 = vld [vmem:[%s1 + $0x118] sm:$0xff]
        %v259 = vld [vmem:[%s1 + $0x120] sm:$0xff]
        %v260 = vld [vmem:[%s1 + $0x128] sm:$0xff]
        %v261 = vld [vmem:[%s1 + $0x130] sm:$0xff]
        %v262 = vld [vmem:[%s1 + $0x138] sm:$0xff]
        %v263 = vld [vmem:[%s222] sm:$0xff]
        %v264 = vld [vmem:[%s222 + $0x8] sm:$0xff]
        %v265 = vld [vmem:[%s222 + $0x10] sm:$0xff]
        %v266 = vld [vmem:[%s222 + $0x18] sm:$0xff]
        %v267 = vld [vmem:[%s222 + $0x20] sm:$0xff]
        %v268 = vld [vmem:[%s222 + $0x28] sm:$0xff]
        %v269 = vld [vmem:[%s222 + $0x30] sm:$0xff]
        %v270 = vld [vmem:[%s222 + $0x38] sm:$0xff]
        %v271 = vld [vmem:[%s222 + $0x40] sm:$0xff]
        %v272 = vld [vmem:[%s222 + $0x48] sm:$0xff]
        %v273 = vld [vmem:[%s222 + $0x50] sm:$0xff]
        %v274 = vld [vmem:[%s222 + $0x58] sm:$0xff]
        %v275 = vld [vmem:[%s222 + $0x60] sm:$0xff]
        %v276 = vld [vmem:[%s222 + $0x68] sm:$0xff]
        %v277 = vld [vmem:[%s222 + $0x70] sm:$0xff]
        %v278 = vld [vmem:[%s222 + $0x78] sm:$0xff]
        %v279 = vld [vmem:[%s222 + $0x80] sm:$0xff]
        %v280 = vld [vmem:[%s222 + $0x88] sm:$0xff]
        %v281 = vld [vmem:[%s222 + $0x90] sm:$0xff]
        %v282 = vld [vmem:[%s222 + $0x98] sm:$0xff]
        %v283 = vld [vmem:[%s222 + $0xa0] sm:$0xff]
        %v284 = vld [vmem:[%s222 + $0xa8] sm:$0xff]
        %v285 = vld [vmem:[%s222 + $0xb0] sm:$0xff]
        %v286 = vld [vmem:[%s222 + $0xb8] sm:$0xff]
        %v287 = vld [vmem:[%s222 + $0xc0] sm:$0xff]
        %v288 = vld [vmem:[%s222 + $0xc8] sm:$0xff]
        %v289 = vld [vmem:[%s222 + $0xd0] sm:$0xff]
        %v290 = vld [vmem:[%s222 + $0xd8] sm:$0xff]
        %v291 = vld [vmem:[%s222 + $0xe0] sm:$0xff]
        %v292 = vld [vmem:[%s222 + $0xe8] sm:$0xff]
        %v293 = vld [vmem:[%s222 + $0xf0] sm:$0xff]
        %v294 = vld [vmem:[%s222 + $0xf8] sm:$0xff]
        %v295 = vld [vmem:[%s222 + $0x100] sm:$0xff]
        %v296 = vld [vmem:[%s222 + $0x108] sm:$0xff]
        %v297 = vld [vmem:[%s222 + $0x110] sm:$0xff]
        %v298 = vld [vmem:[%s222 + $0x118] sm:$0xff]
        %v299 = vld [vmem:[%s222 + $0x120] sm:$0xff]
        %v300 = vld [vmem:[%s222 + $0x128] sm:$0xff]
        %v301 = vld [vmem:[%s222 + $0x130] sm:$0xff]
        %v302 = vld [vmem:[%s222 + $0x138] sm:$0xff]
        %v303 = vld [vmem:[%s222 + $0x140] sm:$0xff]
        %v304 = vld [vmem:[%s222 + $0x148] sm:$0xff]
        %v305 = vld [vmem:[%s222 + $0x150] sm:$0xff]
        %v306 = vld [vmem:[%s222 + $0x158] sm:$0xff]
        %v307 = vld [vmem:[%s222 + $0x160] sm:$0xff]
        %v308 = vld [vmem:[%s222 + $0x168] sm:$0xff]
        %v309 = vld [vmem:[%s222 + $0x170] sm:$0xff]
        %v310 = vld [vmem:[%s222 + $0x178] sm:$0xff]
        %v311 = vld [vmem:[%s222 + $0x180] sm:$0xff]
        %v312 = vld [vmem:[%s222 + $0x188] sm:$0xff]
        %vm313 = vcmask 130048
        %v315 = vsel %vm313, %v226, 0
        %v318 = vsel %vm313, %v230, 0
        %v321 = vsel %vm313, %v234, 0
        %v324 = vsel %vm313, %v238, 0
        %v327 = vsel %vm313, %v242, 0
        %v330 = vsel %vm313, %v246, 0
        %v333 = vsel %vm313, %v250, 0
        %v336 = vsel %vm313, %v254, 0
        %v339 = vsel %vm313, %v258, 0
        %v342 = vsel %vm313, %v262, 0
        %344 = vmatprep.subr.mxu0 0.0
        %345 = vmatpush1.msra.mxu0 %v263
        %346 = vmatprep.subr.mxu0 0.0
        %347 = vmatpush1.msra.mxu0 %v264
        %348 = vmatprep.subr.mxu0 0.0
        %349 = vmatpush1.msra.mxu0 %v265
        %350 = vmatprep.subr.mxu0 0.0
        %351 = vmatpush1.msra.mxu0 %v266
        %352 = vmatprep.subr.mxu0 0.0
        %353 = vmatpush1.msra.mxu0 %v267
        %354 = vmatprep.subr.mxu0 0.0
        %355 = vmatpush1.msra.mxu0 %v268
        %356 = vmatprep.subr.mxu0 0.0
        %357 = vmatpush1.msra.mxu0 %v269
        %358 = vmatprep.subr.mxu0 0.0
        %359 = vmatpush1.msra.mxu0 %v270
        %360 = vmatprep.subr.mxu0 0.0
        %361 = vmatpush1.msra.mxu0 %v271
        %362 = vmatprep.subr.mxu0 0.0
        %363 = vmatpush1.msra.mxu0 %v272
        %364 = vmatprep.subr.mxu0 0.0
        %365 = vmatpush1.msra.mxu0 %v273
        %366 = vmatprep.subr.mxu0 0.0
        %367 = vmatpush1.msra.mxu0 %v274
        %368 = vmatprep.subr.mxu0 0.0
        %369 = vmatpush1.msra.mxu0 %v275
        %370 = vmatprep.subr.mxu0 0.0
        %371 = vmatpush1.msra.mxu0 %v276
        %372 = vmatprep.subr.mxu0 0.0
        %373 = vmatpush1.msra.mxu0 %v277
        %374 = vmatprep.subr.mxu0 0.0
        %375 = vmatpush1.msra.mxu0 %v278
        %376 = vmatprep.subr.mxu0 0.0
        %377 = vmatpush1.msra.mxu0 %v279
        %378 = vmatprep.subr.mxu0 0.0
        %379 = vmatpush1.msra.mxu0 %v280
        %380 = vmatprep.subr.mxu0 0.0
        %381 = vmatpush1.msra.mxu0 %v281
        %382 = vmatprep.subr.mxu0 0.0
        %383 = vmatpush1.msra.mxu0 %v282
        %384 = vmatprep.subr.mxu0 0.0
        %385 = vmatpush1.msra.mxu0 %v283
        %386 = vmatprep.subr.mxu0 0.0
        %387 = vmatpush1.msra.mxu0 %v284
        %388 = vmatprep.subr.mxu0 0.0
        %389 = vmatpush1.msra.mxu0 %v285
        %390 = vmatprep.subr.mxu0 0.0
        %391 = vmatpush1.msra.mxu0 %v286
        %392 = vmatprep.subr.mxu0 0.0
        %393 = vmatpush1.msra.mxu0 %v287
        %394 = vmatprep.subr.mxu0 0.0
        %395 = vmatpush1.msra.mxu0 %v288
        %396 = vmatprep.subr.mxu0 0.0
        %397 = vmatpush1.msra.mxu0 %v289
        %398 = vmatprep.subr.mxu0 0.0
        %399 = vmatpush1.msra.mxu0 %v290
        %400 = vmatprep.subr.mxu0 0.0
        %401 = vmatpush1.msra.mxu0 %v291
        %402 = vmatprep.subr.mxu0 0.0
        %403 = vmatpush1.msra.mxu0 %v292
        %404 = vmatprep.subr.mxu0 0.0
        %405 = vmatpush1.msra.mxu0 %v293
        %406 = vmatprep.subr.mxu0 0.0
        %407 = vmatpush1.msra.mxu0 %v294
        %408 = vmatprep.mubr.f32.mxu0 %v224
        %409 = vmatmul.mubr.f32.gmra.mrb[0].mxu0 %v223
        %v410 = vpop.f32.mrb[0].mxu0
        %v411 = vadd.f32 0.0, %v410
        %v412 = vpop.f32.mrb[0].mxu0
        %413 = vmatprep.mubr.f32.mxu0 %v228
        %414 = vmatmul.mubr.f32.gmra.mrb[0].mxu0 %v227
        %v415 = vpop.f32.mrb[0].mxu0
        %v416 = vadd.f32 0.0, %v415
        %v417 = vpop.f32.mrb[0].mxu0
        %418 = vmatprep.mubr.f32.mxu0 %v232
        %419 = vmatmul.mubr.f32.gmra.mrb[0].mxu0 %v231
        %v420 = vpop.f32.mrb[0].mxu0
        %v421 = vadd.f32 0.0, %v420
        %v422 = vpop.f32.mrb[0].mxu0
        %423 = vmatprep.mubr.f32.mxu0 %v236
        %424 = vmatmul.mubr.f32.gmra.mrb[0].mxu0 %v235
        %v425 = vpop.f32.mrb[0].mxu0
        %v426 = vadd.f32 0.0, %v425
        %v427 = vpop.f32.mrb[0].mxu0
        %428 = vmatprep.mubr.f32.mxu0 %v240
        %429 = vmatmul.mubr.f32.gmra.mrb[0].mxu0 %v239
        %v430 = vpop.f32.mrb[0].mxu0
        %v431 = vadd.f32 0.0, %v430
        %v432 = vpop.f32.mrb[0].mxu0
        %433 = vmatprep.mubr.f32.mxu0 %v244
        %434 = vmatmul.mubr.f32.gmra.mrb[0].mxu0 %v243
        %v435 = vpop.f32.mrb[0].mxu0
        %v436 = vadd.f32 0.0, %v435
        %v437 = vpop.f32.mrb[0].mxu0
        %438 = vmatprep.mubr.f32.mxu0 %v248
        %439 = vmatmul.mubr.f32.gmra.mrb[0].mxu0 %v247
        %v440 = vpop.f32.mrb[0].mxu0
        %v441 = vadd.f32 0.0, %v440
        %v442 = vpop.f32.mrb[0].mxu0
        %443 = vmatprep.mubr.f32.mxu0 %v252
        %444 = vmatmul.mubr.f32.gmra.mrb[0].mxu0 %v251
        %v445 = vpop.f32.mrb[0].mxu0
        %v446 = vadd.f32 0.0, %v445
        %v447 = vpop.f32.mrb[0].mxu0
        %448 = vmatprep.mubr.f32.mxu0 %v256
        %449 = vmatmul.mubr.f32.gmra.mrb[0].mxu0 %v255
        %v450 = vpop.f32.mrb[0].mxu0
        %v451 = vadd.f32 0.0, %v450
        %v452 = vpop.f32.mrb[0].mxu0
        %453 = vmatprep.mubr.f32.mxu0 %v260
        %454 = vmatmul.mubr.f32.gmra.mrb[0].mxu0 %v259
        %v455 = vpop.f32.mrb[0].mxu0
        %v456 = vadd.f32 0.0, %v455
        %v457 = vpop.f32.mrb[0].mxu0
        %458 = vdwg.mxu0
        %459 = vmatprep.subr.mxu0 0.0
        %460 = vmatpush1.msra.mxu0 %v295
        %461 = vmatprep.subr.mxu0 0.0
        %462 = vmatpush1.msra.mxu0 %v296
        %463 = vmatprep.subr.mxu0 0.0
        %464 = vmatpush1.msra.mxu0 %v297
        %465 = vmatprep.subr.mxu0 0.0
        %466 = vmatpush1.msra.mxu0 %v298
        %467 = vmatprep.subr.mxu0 0.0
        %468 = vmatpush1.msra.mxu0 %v299
        %469 = vmatprep.subr.mxu0 0.0
        %470 = vmatpush1.msra.mxu0 %v300
        %471 = vmatprep.subr.mxu0 0.0
        %472 = vmatpush1.msra.mxu0 %v301
        %473 = vmatprep.subr.mxu0 0.0
        %474 = vmatpush1.msra.mxu0 %v302
        %475 = vmatprep.subr.mxu0 0.0
        %476 = vmatpush1.msra.mxu0 %v303
        %477 = vmatprep.subr.mxu0 0.0
        %478 = vmatpush1.msra.mxu0 %v304
        %479 = vmatprep.subr.mxu0 0.0
        %480 = vmatpush1.msra.mxu0 %v305
        %481 = vmatprep.subr.mxu0 0.0
        %482 = vmatpush1.msra.mxu0 %v306
        %483 = vmatprep.subr.mxu0 0.0
        %484 = vmatpush1.msra.mxu0 %v307
        %485 = vmatprep.subr.mxu0 0.0
        %486 = vmatpush1.msra.mxu0 %v308
        %487 = vmatprep.subr.mxu0 0.0
        %488 = vmatpush1.msra.mxu0 %v309
        %489 = vmatprep.subr.mxu0 0.0
        %490 = vmatpush1.msra.mxu0 %v310
        %491 = vmatprep.subr.mxu0 0.0
        %492 = vmatpush1.msra.mxu0 %v311
        %493 = vmatprep.subr.mxu0 0.0
        %494 = vmatpush1.msra.mxu0 %v312
        %495 = vmatprep.subr.mxu0 0.0
        %496 = vmatpush1.msra.mxu0 0.0
        %497 = vmatprep.subr.mxu0 0.0
        %498 = vmatpush1.msra.mxu0 0.0
        %499 = vmatprep.subr.mxu0 0.0
        %500 = vmatpush1.msra.mxu0 0.0
        %501 = vmatprep.subr.mxu0 0.0
        %502 = vmatpush1.msra.mxu0 0.0
        %503 = vmatprep.subr.mxu0 0.0
        %504 = vmatpush1.msra.mxu0 0.0
        %505 = vmatprep.subr.mxu0 0.0
        %506 = vmatpush1.msra.mxu0 0.0
        %507 = vmatprep.subr.mxu0 0.0
        %508 = vmatpush1.msra.mxu0 0.0
        %509 = vmatprep.subr.mxu0 0.0
        %510 = vmatpush1.msra.mxu0 0.0
        %511 = vmatprep.subr.mxu0 0.0
        %512 = vmatpush1.msra.mxu0 0.0
        %513 = vmatprep.subr.mxu0 0.0
        %514 = vmatpush1.msra.mxu0 0.0
        %515 = vmatprep.subr.mxu0 0.0
        %516 = vmatpush1.msra.mxu0 0.0
        %517 = vmatprep.subr.mxu0 0.0
        %518 = vmatpush1.msra.mxu0 0.0
        %519 = vmatprep.subr.mxu0 0.0
        %520 = vmatpush1.msra.mxu0 0.0
        %521 = vmatprep.subr.mxu0 0.0
        %522 = vmatpush1.msra.mxu0 0.0
        %523 = vmatprep.mubr.f32.mxu0 %v315
        %524 = vmatmul.mubr.f32.gmra.mrb[0].mxu0 %v225
        %v525 = vpop.f32.mrb[0].mxu0
        %v526 = vadd.f32 %v411, %v525
        %v527 = vpop.f32.mrb[0].mxu0
        %528 = vmatprep.mubr.f32.mxu0 %v318
        %529 = vmatmul.mubr.f32.gmra.mrb[0].mxu0 %v229
        %v530 = vpop.f32.mrb[0].mxu0
        %v531 = vadd.f32 %v416, %v530
        %v532 = vpop.f32.mrb[0].mxu0
        %533 = vmatprep.mubr.f32.mxu0 %v321
        %534 = vmatmul.mubr.f32.gmra.mrb[0].mxu0 %v233
        %v535 = vpop.f32.mrb[0].mxu0
        %v536 = vadd.f32 %v421, %v535
        %v537 = vpop.f32.mrb[0].mxu0
        %538 = vmatprep.mubr.f32.mxu0 %v324
        %539 = vmatmul.mubr.f32.gmra.mrb[0].mxu0 %v237
        %v540 = vpop.f32.mrb[0].mxu0
        %v541 = vadd.f32 %v426, %v540
        %v542 = vpop.f32.mrb[0].mxu0
        %543 = vmatprep.mubr.f32.mxu0 %v327
        %544 = vmatmul.mubr.f32.gmra.mrb[0].mxu0 %v241
        %v545 = vpop.f32.mrb[0].mxu0
        %v546 = vadd.f32 %v431, %v545
        %v547 = vpop.f32.mrb[0].mxu0
        %548 = vmatprep.mubr.f32.mxu0 %v330
        %549 = vmatmul.mubr.f32.gmra.mrb[0].mxu0 %v245
        %v550 = vpop.f32.mrb[0].mxu0
        %v551 = vadd.f32 %v436, %v550
        %v552 = vpop.f32.mrb[0].mxu0
        %553 = vmatprep.mubr.f32.mxu0 %v333
        %554 = vmatmul.mubr.f32.gmra.mrb[0].mxu0 %v249
        %v555 = vpop.f32.mrb[0].mxu0
        %v556 = vadd.f32 %v441, %v555
        %v557 = vpop.f32.mrb[0].mxu0
        %558 = vmatprep.mubr.f32.mxu0 %v336
        %559 = vmatmul.mubr.f32.gmra.mrb[0].mxu0 %v253
        %v560 = vpop.f32.mrb[0].mxu0
        %v561 = vadd.f32 %v446, %v560
        %v562 = vpop.f32.mrb[0].mxu0
        %563 = vmatprep.mubr.f32.mxu0 %v339
        %564 = vmatmul.mubr.f32.gmra.mrb[0].mxu0 %v257
        %v565 = vpop.f32.mrb[0].mxu0
        %v566 = vadd.f32 %v451, %v565
        %v567 = vpop.f32.mrb[0].mxu0
        %568 = vmatprep.mubr.f32.mxu0 %v342
        %569 = vmatmul.mubr.f32.gmra.mrb[0].mxu0 %v261
        %v570 = vpop.f32.mrb[0].mxu0
        %v571 = vadd.f32 %v456, %v570
        %v572 = vpop.f32.mrb[0].mxu0
        %573 = vdwg.mxu0
        %vm574 = vcmask 97280
        %575 = vst.msk [vmem:[#allocation2] sm:$0xff] %vm574, %v526
        %576 = vst.msk [vmem:[#allocation2 + $0x8] sm:$0xff] %vm574, %v531
        %577 = vst.msk [vmem:[#allocation2 + $0x10] sm:$0xff] %vm574, %v536
        %578 = vst.msk [vmem:[#allocation2 + $0x18] sm:$0xff] %vm574, %v541
        %579 = vst.msk [vmem:[#allocation2 + $0x20] sm:$0xff] %vm574, %v546
        %580 = vst.msk [vmem:[#allocation2 + $0x28] sm:$0xff] %vm574, %v551
        %581 = vst.msk [vmem:[#allocation2 + $0x30] sm:$0xff] %vm574, %v556
        %582 = vst.msk [vmem:[#allocation2 + $0x38] sm:$0xff] %vm574, %v561
        %583 = vst.msk [vmem:[#allocation2 + $0x40] sm:$0xff] %vm574, %v566
        %584 = vst.msk [vmem:[#allocation2 + $0x48] sm:$0xff] %vm574, %v571
        %v585 = vld [vmem:[%s1] sm:$0xff]
        %v586 = vld [vmem:[%s1 + $0x8] sm:$0xff]
        %v587 = vld [vmem:[%s1 + $0x10] sm:$0xff]
        %v588 = vld [vmem:[%s1 + $0x18] sm:$0xff]
        %v589 = vld [vmem:[%s1 + $0x20] sm:$0xff]
        %v590 = vld [vmem:[%s1 + $0x28] sm:$0xff]
        %v591 = vld [vmem:[%s1 + $0x30] sm:$0xff]
        %v592 = vld [vmem:[%s1 + $0x38] sm:$0xff]
        %v593 = vld [vmem:[%s1 + $0x40] sm:$0xff]
        %v594 = vld [vmem:[%s1 + $0x48] sm:$0xff]
        %v595 = vld [vmem:[%s1 + $0x50] sm:$0xff]
        %v596 = vld [vmem:[%s1 + $0x58] sm:$0xff]
        %v597 = vld [vmem:[%s1 + $0x60] sm:$0xff]
        %v598 = vld [vmem:[%s1 + $0x68] sm:$0xff]
        %v599 = vld [vmem:[%s1 + $0x70] sm:$0xff]
        %v600 = vld [vmem:[%s1 + $0x78] sm:$0xff]
        %v601 = vld [vmem:[%s1 + $0x80] sm:$0xff]
        %v602 = vld [vmem:[%s1 + $0x88] sm:$0xff]
        %v603 = vld [vmem:[%s1 + $0x90] sm:$0xff]
        %v604 = vld [vmem:[%s1 + $0x98] sm:$0xff]
        %v605 = vld [vmem:[%s1 + $0xa0] sm:$0xff]
        %v606 = vld [vmem:[%s1 + $0xa8] sm:$0xff]
        %v607 = vld [vmem:[%s1 + $0xb0] sm:$0xff]
        %v608 = vld [vmem:[%s1 + $0xb8] sm:$0xff]
        %v609 = vld [vmem:[%s1 + $0xc0] sm:$0xff]
        %v610 = vld [vmem:[%s1 + $0xc8] sm:$0xff]
        %v611 = vld [vmem:[%s1 + $0xd0] sm:$0xff]
        %v612 = vld [vmem:[%s1 + $0xd8] sm:$0xff]
        %v613 = vld [vmem:[%s1 + $0xe0] sm:$0xff]
        %v614 = vld [vmem:[%s1 + $0xe8] sm:$0xff]
        %v615 = vld [vmem:[%s1 + $0xf0] sm:$0xff]
        %v616 = vld [vmem:[%s1 + $0xf8] sm:$0xff]
        %v617 = vld [vmem:[%s1 + $0x100] sm:$0xff]
        %v618 = vld [vmem:[%s1 + $0x108] sm:$0xff]
        %v619 = vld [vmem:[%s1 + $0x110] sm:$0xff]
        %v620 = vld [vmem:[%s1 + $0x118] sm:$0xff]
        %v621 = vld [vmem:[%s1 + $0x120] sm:$0xff]
        %v622 = vld [vmem:[%s1 + $0x128] sm:$0xff]
        %v623 = vld [vmem:[%s1 + $0x130] sm:$0xff]
        %v624 = vld [vmem:[%s1 + $0x138] sm:$0xff]
        %s625 = scalar_lea.vmem %s222, 400
        %v626 = vld [vmem:[%s625] sm:$0xff]
        %v627 = vld [vmem:[%s625 + $0x8] sm:$0xff]
        %v628 = vld [vmem:[%s625 + $0x10] sm:$0xff]
        %v629 = vld [vmem:[%s625 + $0x18] sm:$0xff]
        %v630 = vld [vmem:[%s625 + $0x20] sm:$0xff]
        %v631 = vld [vmem:[%s625 + $0x28] sm:$0xff]
        %v632 = vld [vmem:[%s625 + $0x30] sm:$0xff]
        %v633 = vld [vmem:[%s625 + $0x38] sm:$0xff]
        %v634 = vld [vmem:[%s625 + $0x40] sm:$0xff]
        %v635 = vld [vmem:[%s625 + $0x48] sm:$0xff]
        %v636 = vld [vmem:[%s625 + $0x50] sm:$0xff]
        %v637 = vld [vmem:[%s625 + $0x58] sm:$0xff]
        %v638 = vld [vmem:[%s625 + $0x60] sm:$0xff]
        %v639 = vld [vmem:[%s625 + $0x68] sm:$0xff]
        %v640 = vld [vmem:[%s625 + $0x70] sm:$0xff]
        %v641 = vld [vmem:[%s625 + $0x78] sm:$0xff]
        %v642 = vld [vmem:[%s625 + $0x80] sm:$0xff]
        %v643 = vld [vmem:[%s625 + $0x88] sm:$0xff]
        %v644 = vld [vmem:[%s625 + $0x90] sm:$0xff]
        %v645 = vld [vmem:[%s625 + $0x98] sm:$0xff]
        %v646 = vld [vmem:[%s625 + $0xa0] sm:$0xff]
        %v647 = vld [vmem:[%s625 + $0xa8] sm:$0xff]
        %v648 = vld [vmem:[%s625 + $0xb0] sm:$0xff]
        %v649 = vld [vmem:[%s625 + $0xb8] sm:$0xff]
        %v650 = vld [vmem:[%s625 + $0xc0] sm:$0xff]
        %v651 = vld [vmem:[%s625 + $0xc8] sm:$0xff]
        %v652 = vld [vmem:[%s625 + $0xd0] sm:$0xff]
        %v653 = vld [vmem:[%s625 + $0xd8] sm:$0xff]
        %v654 = vld [vmem:[%s625 + $0xe0] sm:$0xff]
        %v655 = vld [vmem:[%s625 + $0xe8] sm:$0xff]
        %v656 = vld [vmem:[%s625 + $0xf0] sm:$0xff]
        %v657 = vld [vmem:[%s625 + $0xf8] sm:$0xff]
        %v658 = vld [vmem:[%s625 + $0x100] sm:$0xff]
        %v659 = vld [vmem:[%s625 + $0x108] sm:$0xff]
        %v660 = vld [vmem:[%s625 + $0x110] sm:$0xff]
        %v661 = vld [vmem:[%s625 + $0x118] sm:$0xff]
        %v662 = vld [vmem:[%s625 + $0x120] sm:$0xff]
        %v663 = vld [vmem:[%s625 + $0x128] sm:$0xff]
        %v664 = vld [vmem:[%s625 + $0x130] sm:$0xff]
        %v665 = vld [vmem:[%s625 + $0x138] sm:$0xff]
        %v666 = vld [vmem:[%s625 + $0x140] sm:$0xff]
        %v667 = vld [vmem:[%s625 + $0x148] sm:$0xff]
        %v668 = vld [vmem:[%s625 + $0x150] sm:$0xff]
        %v669 = vld [vmem:[%s625 + $0x158] sm:$0xff]
        %v670 = vld [vmem:[%s625 + $0x160] sm:$0xff]
        %v671 = vld [vmem:[%s625 + $0x168] sm:$0xff]
        %v672 = vld [vmem:[%s625 + $0x170] sm:$0xff]
        %v673 = vld [vmem:[%s625 + $0x178] sm:$0xff]
        %v674 = vld [vmem:[%s625 + $0x180] sm:$0xff]
        %v675 = vld [vmem:[%s625 + $0x188] sm:$0xff]
        %v677 = vsel %vm313, %v588, 0
        %v680 = vsel %vm313, %v592, 0
        %v683 = vsel %vm313, %v596, 0
        %v686 = vsel %vm313, %v600, 0
        %v689 = vsel %vm313, %v604, 0
        %v692 = vsel %vm313, %v608, 0
        %v695 = vsel %vm313, %v612, 0
        %v698 = vsel %vm313, %v616, 0
        %v701 = vsel %vm313, %v620, 0
        %v704 = vsel %vm313, %v624, 0
        %706 = vmatprep.subr.mxu0 0.0
        %707 = vmatpush1.msra.mxu0 %v626
        %708 = vmatprep.subr.mxu0 0.0
        %709 = vmatpush1.msra.mxu0 %v627
        %710 = vmatprep.subr.mxu0 0.0
        %711 = vmatpush1.msra.mxu0 %v628
        %712 = vmatprep.subr.mxu0 0.0
        %713 = vmatpush1.msra.mxu0 %v629
        %714 = vmatprep.subr.mxu0 0.0
        %715 = vmatpush1.msra.mxu0 %v630
        %716 = vmatprep.subr.mxu0 0.0
        %717 = vmatpush1.msra.mxu0 %v631
        %718 = vmatprep.subr.mxu0 0.0
        %719 = vmatpush1.msra.mxu0 %v632
        %720 = vmatprep.subr.mxu0 0.0
        %721 = vmatpush1.msra.mxu0 %v633
        %722 = vmatprep.subr.mxu0 0.0
        %723 = vmatpush1.msra.mxu0 %v634
        %724 = vmatprep.subr.mxu0 0.0
        %725 = vmatpush1.msra.mxu0 %v635
        %726 = vmatprep.subr.mxu0 0.0
        %727 = vmatpush1.msra.mxu0 %v636
        %728 = vmatprep.subr.mxu0 0.0
        %729 = vmatpush1.msra.mxu0 %v637
        %730 = vmatprep.subr.mxu0 0.0
        %731 = vmatpush1.msra.mxu0 %v638
        %732 = vmatprep.subr.mxu0 0.0
        %733 = vmatpush1.msra.mxu0 %v639
        %734 = vmatprep.subr.mxu0 0.0
        %735 = vmatpush1.msra.mxu0 %v640
        %736 = vmatprep.subr.mxu0 0.0
        %737 = vmatpush1.msra.mxu0 %v641
        %738 = vmatprep.subr.mxu0 0.0
        %739 = vmatpush1.msra.mxu0 %v642
        %740 = vmatprep.subr.mxu0 0.0
        %741 = vmatpush1.msra.mxu0 %v643
        %742 = vmatprep.subr.mxu0 0.0
        %743 = vmatpush1.msra.mxu0 %v644
        %744 = vmatprep.subr.mxu0 0.0
        %745 = vmatpush1.msra.mxu0 %v645
        %746 = vmatprep.subr.mxu0 0.0
        %747 = vmatpush1.msra.mxu0 %v646
        %748 = vmatprep.subr.mxu0 0.0
        %749 = vmatpush1.msra.mxu0 %v647
        %750 = vmatprep.subr.mxu0 0.0
        %751 = vmatpush1.msra.mxu0 %v648
        %752 = vmatprep.subr.mxu0 0.0
        %753 = vmatpush1.msra.mxu0 %v649
        %754 = vmatprep.subr.mxu0 0.0
        %755 = vmatpush1.msra.mxu0 %v650
        %756 = vmatprep.subr.mxu0 0.0
        %757 = vmatpush1.msra.mxu0 %v651
        %758 = vmatprep.subr.mxu0 0.0
        %759 = vmatpush1.msra.mxu0 %v652
        %760 = vmatprep.subr.mxu0 0.0
        %761 = vmatpush1.msra.mxu0 %v653
        %762 = vmatprep.subr.mxu0 0.0
        %763 = vmatpush1.msra.mxu0 %v654
        %764 = vmatprep.subr.mxu0 0.0
        %765 = vmatpush1.msra.mxu0 %v655
        %766 = vmatprep.subr.mxu0 0.0
        %767 = vmatpush1.msra.mxu0 %v656
        %768 = vmatprep.subr.mxu0 0.0
        %769 = vmatpush1.msra.mxu0 %v657
        %770 = vmatprep.mubr.f32.mxu0 %v586
        %771 = vmatmul.mubr.f32.gmra.mrb[0].mxu0 %v585
        %v772 = vpop.f32.mrb[0].mxu0
        %v773 = vadd.f32 0.0, %v772
        %v774 = vpop.f32.mrb[0].mxu0
        %775 = vmatprep.mubr.f32.mxu0 %v590
        %776 = vmatmul.mubr.f32.gmra.mrb[0].mxu0 %v589
        %v777 = vpop.f32.mrb[0].mxu0
        %v778 = vadd.f32 0.0, %v777
        %v779 = vpop.f32.mrb[0].mxu0
        %780 = vmatprep.mubr.f32.mxu0 %v594
        %781 = vmatmul.mubr.f32.gmra.mrb[0].mxu0 %v593
        %v782 = vpop.f32.mrb[0].mxu0
        %v783 = vadd.f32 0.0, %v782
        %v784 = vpop.f32.mrb[0].mxu0
        %785 = vmatprep.mubr.f32.mxu0 %v598
        %786 = vmatmul.mubr.f32.gmra.mrb[0].mxu0 %v597
        %v787 = vpop.f32.mrb[0].mxu0
        %v788 = vadd.f32 0.0, %v787
        %v789 = vpop.f32.mrb[0].mxu0
        %790 = vmatprep.mubr.f32.mxu0 %v602
        %791 = vmatmul.mubr.f32.gmra.mrb[0].mxu0 %v601
        %v792 = vpop.f32.mrb[0].mxu0
        %v793 = vadd.f32 0.0, %v792
        %v794 = vpop.f32.mrb[0].mxu0
        %795 = vmatprep.mubr.f32.mxu0 %v606
        %796 = vmatmul.mubr.f32.gmra.mrb[0].mxu0 %v605
        %v797 = vpop.f32.mrb[0].mxu0
        %v798 = vadd.f32 0.0, %v797
        %v799 = vpop.f32.mrb[0].mxu0
        %800 = vmatprep.mubr.f32.mxu0 %v610
        %801 = vmatmul.mubr.f32.gmra.mrb[0].mxu0 %v609
        %v802 = vpop.f32.mrb[0].mxu0
        %v803 = vadd.f32 0.0, %v802
        %v804 = vpop.f32.mrb[0].mxu0
        %805 = vmatprep.mubr.f32.mxu0 %v614
        %806 = vmatmul.mubr.f32.gmra.mrb[0].mxu0 %v613
        %v807 = vpop.f32.mrb[0].mxu0
        %v808 = vadd.f32 0.0, %v807
        %v809 = vpop.f32.mrb[0].mxu0
        %810 = vmatprep.mubr.f32.mxu0 %v618
        %811 = vmatmul.mubr.f32.gmra.mrb[0].mxu0 %v617
        %v812 = vpop.f32.mrb[0].mxu0
        %v813 = vadd.f32 0.0, %v812
        %v814 = vpop.f32.mrb[0].mxu0
        %815 = vmatprep.mubr.f32.mxu0 %v622
        %816 = vmatmul.mubr.f32.gmra.mrb[0].mxu0 %v621
        %v817 = vpop.f32.mrb[0].mxu0
        %v818 = vadd.f32 0.0, %v817
        %v819 = vpop.f32.mrb[0].mxu0
        %820 = vdwg.mxu0
        %821 = vmatprep.subr.mxu0 0.0
        %822 = vmatpush1.msra.mxu0 %v658
        %823 = vmatprep.subr.mxu0 0.0
        %824 = vmatpush1.msra.mxu0 %v659
        %825 = vmatprep.subr.mxu0 0.0
        %826 = vmatpush1.msra.mxu0 %v660
        %827 = vmatprep.subr.mxu0 0.0
        %828 = vmatpush1.msra.mxu0 %v661
        %829 = vmatprep.subr.mxu0 0.0
        %830 = vmatpush1.msra.mxu0 %v662
        %831 = vmatprep.subr.mxu0 0.0
        %832 = vmatpush1.msra.mxu0 %v663
        %833 = vmatprep.subr.mxu0 0.0
        %834 = vmatpush1.msra.mxu0 %v664
        %835 = vmatprep.subr.mxu0 0.0
        %836 = vmatpush1.msra.mxu0 %v665
        %837 = vmatprep.subr.mxu0 0.0
        %838 = vmatpush1.msra.mxu0 %v666
        %839 = vmatprep.subr.mxu0 0.0
        %840 = vmatpush1.msra.mxu0 %v667
        %841 = vmatprep.subr.mxu0 0.0
        %842 = vmatpush1.msra.mxu0 %v668
        %843 = vmatprep.subr.mxu0 0.0
        %844 = vmatpush1.msra.mxu0 %v669
        %845 = vmatprep.subr.mxu0 0.0
        %846 = vmatpush1.msra.mxu0 %v670
        %847 = vmatprep.subr.mxu0 0.0
        %848 = vmatpush1.msra.mxu0 %v671
        %849 = vmatprep.subr.mxu0 0.0
        %850 = vmatpush1.msra.mxu0 %v672
        %851 = vmatprep.subr.mxu0 0.0
        %852 = vmatpush1.msra.mxu0 %v673
        %853 = vmatprep.subr.mxu0 0.0
        %854 = vmatpush1.msra.mxu0 %v674
        %855 = vmatprep.subr.mxu0 0.0
        %856 = vmatpush1.msra.mxu0 %v675
        %857 = vmatprep.subr.mxu0 0.0
        %858 = vmatpush1.msra.mxu0 0.0
        %859 = vmatprep.subr.mxu0 0.0
        %860 = vmatpush1.msra.mxu0 0.0
        %861 = vmatprep.subr.mxu0 0.0
        %862 = vmatpush1.msra.mxu0 0.0
        %863 = vmatprep.subr.mxu0 0.0
        %864 = vmatpush1.msra.mxu0 0.0
        %865 = vmatprep.subr.mxu0 0.0
        %866 = vmatpush1.msra.mxu0 0.0
        %867 = vmatprep.subr.mxu0 0.0
        %868 = vmatpush1.msra.mxu0 0.0
        %869 = vmatprep.subr.mxu0 0.0
        %870 = vmatpush1.msra.mxu0 0.0
        %871 = vmatprep.subr.mxu0 0.0
        %872 = vmatpush1.msra.mxu0 0.0
        %873 = vmatprep.subr.mxu0 0.0
        %874 = vmatpush1.msra.mxu0 0.0
        %875 = vmatprep.subr.mxu0 0.0
        %876 = vmatpush1.msra.mxu0 0.0
        %877 = vmatprep.subr.mxu0 0.0
        %878 = vmatpush1.msra.mxu0 0.0
        %879 = vmatprep.subr.mxu0 0.0
        %880 = vmatpush1.msra.mxu0 0.0
        %881 = vmatprep.subr.mxu0 0.0
        %882 = vmatpush1.msra.mxu0 0.0
        %883 = vmatprep.subr.mxu0 0.0
        %884 = vmatpush1.msra.mxu0 0.0
        %885 = vmatprep.mubr.f32.mxu0 %v677
        %886 = vmatmul.mubr.f32.gmra.mrb[0].mxu0 %v587
        %v887 = vpop.f32.mrb[0].mxu0
        %v888 = vadd.f32 %v773, %v887
        %v889 = vpop.f32.mrb[0].mxu0
        %890 = vmatprep.mubr.f32.mxu0 %v680
        %891 = vmatmul.mubr.f32.gmra.mrb[0].mxu0 %v591
        %v892 = vpop.f32.mrb[0].mxu0
        %v893 = vadd.f32 %v778, %v892
        %v894 = vpop.f32.mrb[0].mxu0
        %895 = vmatprep.mubr.f32.mxu0 %v683
        %896 = vmatmul.mubr.f32.gmra.mrb[0].mxu0 %v595
        %v897 = vpop.f32.mrb[0].mxu0
        %v898 = vadd.f32 %v783, %v897
        %v899 = vpop.f32.mrb[0].mxu0
        %900 = vmatprep.mubr.f32.mxu0 %v686
        %901 = vmatmul.mubr.f32.gmra.mrb[0].mxu0 %v599
        %v902 = vpop.f32.mrb[0].mxu0
        %v903 = vadd.f32 %v788, %v902
        %v904 = vpop.f32.mrb[0].mxu0
        %905 = vmatprep.mubr.f32.mxu0 %v689
        %906 = vmatmul.mubr.f32.gmra.mrb[0].mxu0 %v603
        %v907 = vpop.f32.mrb[0].mxu0
        %v908 = vadd.f32 %v793, %v907
        %v909 = vpop.f32.mrb[0].mxu0
        %910 = vmatprep.mubr.f32.mxu0 %v692
        %911 = vmatmul.mubr.f32.gmra.mrb[0].mxu0 %v607
        %v912 = vpop.f32.mrb[0].mxu0
        %v913 = vadd.f32 %v798, %v912
        %v914 = vpop.f32.mrb[0].mxu0
        %915 = vmatprep.mubr.f32.mxu0 %v695
        %916 = vmatmul.mubr.f32.gmra.mrb[0].mxu0 %v611
        %v917 = vpop.f32.mrb[0].mxu0
        %v918 = vadd.f32 %v803, %v917
        %v919 = vpop.f32.mrb[0].mxu0
        %920 = vmatprep.mubr.f32.mxu0 %v698
        %921 = vmatmul.mubr.f32.gmra.mrb[0].mxu0 %v615
        %v922 = vpop.f32.mrb[0].mxu0
        %v923 = vadd.f32 %v808, %v922
        %v924 = vpop.f32.mrb[0].mxu0
        %925 = vmatprep.mubr.f32.mxu0 %v701
        %926 = vmatmul.mubr.f32.gmra.mrb[0].mxu0 %v619
        %v927 = vpop.f32.mrb[0].mxu0
        %v928 = vadd.f32 %v813, %v927
        %v929 = vpop.f32.mrb[0].mxu0
        %930 = vmatprep.mubr.f32.mxu0 %v704
        %931 = vmatmul.mubr.f32.gmra.mrb[0].mxu0 %v623
        %v932 = vpop.f32.mrb[0].mxu0
        %v933 = vadd.f32 %v818, %v932
        %v934 = vpop.f32.mrb[0].mxu0
        %935 = vdwg.mxu0
        %936 = vst.msk [vmem:[#allocation2 + $0x50] sm:$0xff] %vm574, %v888
        %937 = vst.msk [vmem:[#allocation2 + $0x58] sm:$0xff] %vm574, %v893
        %938 = vst.msk [vmem:[#allocation2 + $0x60] sm:$0xff] %vm574, %v898
        %939 = vst.msk [vmem:[#allocation2 + $0x68] sm:$0xff] %vm574, %v903
        %940 = vst.msk [vmem:[#allocation2 + $0x70] sm:$0xff] %vm574, %v908
        %941 = vst.msk [vmem:[#allocation2 + $0x78] sm:$0xff] %vm574, %v913
        %942 = vst.msk [vmem:[#allocation2 + $0x80] sm:$0xff] %vm574, %v918
        %943 = vst.msk [vmem:[#allocation2 + $0x88] sm:$0xff] %vm574, %v923
        %944 = vst.msk [vmem:[#allocation2 + $0x90] sm:$0xff] %vm574, %v928
        %945 = vst.msk [vmem:[#allocation2 + $0x98] sm:$0xff] %vm574, %v933
        %v946 = vld [vmem:[#allocation2] sm:$0xff]
        %v947 = vld [vmem:[#allocation2 + $0x8] sm:$0xff]
        %v948 = vld [vmem:[#allocation2 + $0x10] sm:$0xff]
        %v949 = vld [vmem:[#allocation2 + $0x18] sm:$0xff]
        %v950 = vld [vmem:[#allocation2 + $0x20] sm:$0xff]
        %v951 = vld [vmem:[#allocation2 + $0x28] sm:$0xff]
        %v952 = vld [vmem:[#allocation2 + $0x30] sm:$0xff]
        %v953 = vld [vmem:[#allocation2 + $0x38] sm:$0xff]
        %v954 = vld [vmem:[#allocation2 + $0x40] sm:$0xff]
        %v955 = vld [vmem:[#allocation2 + $0x48] sm:$0xff]
        %v956 = vld [vmem:[#allocation2 + $0x50] sm:$0xff]
        %v957 = vld [vmem:[#allocation2 + $0x58] sm:$0xff]
        %v958 = vld [vmem:[#allocation2 + $0x60] sm:$0xff]
        %v959 = vld [vmem:[#allocation2 + $0x68] sm:$0xff]
        %v960 = vld [vmem:[#allocation2 + $0x70] sm:$0xff]
        %v961 = vld [vmem:[#allocation2 + $0x78] sm:$0xff]
        %v962 = vld [vmem:[#allocation2 + $0x80] sm:$0xff]
        %v963 = vld [vmem:[#allocation2 + $0x88] sm:$0xff]
        %v964 = vld [vmem:[#allocation2 + $0x90] sm:$0xff]
        %v965 = vld [vmem:[#allocation2 + $0x98] sm:$0xff]
        %v966 = vld [vmem:[%s2] sm:$0xff]
        %v967 = vld [vmem:[%s2 + $0x8] sm:$0xf]
        %p968 = scmp.eq.s32.totalorder %s19, 0
        %v969 = vld [vmem:[%s3] sm:$0xff]
        %v970 = vld [vmem:[%s3 + $0x8] sm:$0xf]
        %s971 = scalar_select %p968, 1, 0
        %v972 = vstv %s971
        %vm973 = vcmp.eq.s32.totalorder %v972, 1
        %v974 = vsel %vm973, %v969, %v966
        %v975 = vsel %vm973, %v970, %v967
        %p976 = scmp.eq.s32.totalorder %s19, 1
        %v977 = vld [vmem:[%s4] sm:$0xff]
        %v978 = vld [vmem:[%s4 + $0x8] sm:$0xf]
        %s979 = scalar_select %p976, 1, 0
        %v980 = vstv %s979
        %vm981 = vcmp.eq.s32.totalorder %v980, 1
        %v982 = vsel %vm981, %v977, %v974
        %v983 = vsel %vm981, %v978, %v975
        %v985 = vsel %vm574, %v946, 0
        %v988 = vsel %vm574, %v947, 0
        %v991 = vsel %vm574, %v948, 0
        %v994 = vsel %vm574, %v949, 0
        %v997 = vsel %vm574, %v950, 0
        %v1000 = vsel %vm574, %v951, 0
        %v1003 = vsel %vm574, %v952, 0
        %v1006 = vsel %vm574, %v953, 0
        %v1009 = vsel %vm574, %v954, 0
        %v1012 = vsel %vm574, %v955, 0
        %v1015 = vsel %vm574, %v956, 0
        %v1018 = vsel %vm574, %v957, 0
        %v1021 = vsel %vm574, %v958, 0
        %v1024 = vsel %vm574, %v959, 0
        %v1027 = vsel %vm574, %v960, 0
        %v1030 = vsel %vm574, %v961, 0
        %v1033 = vsel %vm574, %v962, 0
        %v1036 = vsel %vm574, %v963, 0
        %v1039 = vsel %vm574, %v964, 0
        %v1042 = vsel %vm574, %v965, 0
        %vm1044 = vcmask 1043456
        %v1046 = vsel %vm1044, %v983, 0
        %1048 = vmatprep.subr.mxu0 0.0
        %1049 = vmatpush1.msra.mxu0 %v982
        %1050 = vmatprep.subr.mxu0 0.0
        %1051 = vmatpush1.msra.mxu0 %v1046
        %1052 = vmatprep.subr.mxu0 0.0
        %1053 = vmatpush1.msra.mxu0 0.0
        %1054 = vmatprep.subr.mxu0 0.0
        %1055 = vmatpush1.msra.mxu0 0.0
        %1056 = vmatprep.subr.mxu0 0.0
        %1057 = vmatpush1.msra.mxu0 0.0
        %1058 = vmatprep.subr.mxu0 0.0
        %1059 = vmatpush1.msra.mxu0 0.0
        %1060 = vmatprep.subr.mxu0 0.0
        %1061 = vmatpush1.msra.mxu0 0.0
        %1062 = vmatprep.subr.mxu0 0.0
        %1063 = vmatpush1.msra.mxu0 0.0
        %1064 = vmatprep.subr.mxu0 0.0
        %1065 = vmatpush1.msra.mxu0 0.0
        %1066 = vmatprep.subr.mxu0 0.0
        %1067 = vmatpush1.msra.mxu0 0.0
        %1068 = vmatprep.subr.mxu0 0.0
        %1069 = vmatpush1.msra.mxu0 0.0
        %1070 = vmatprep.subr.mxu0 0.0
        %1071 = vmatpush1.msra.mxu0 0.0
        %1072 = vmatprep.subr.mxu0 0.0
        %1073 = vmatpush1.msra.mxu0 0.0
        %1074 = vmatprep.subr.mxu0 0.0
        %1075 = vmatpush1.msra.mxu0 0.0
        %1076 = vmatprep.subr.mxu0 0.0
        %1077 = vmatpush1.msra.mxu0 0.0
        %1078 = vmatprep.subr.mxu0 0.0
        %1079 = vmatpush1.msra.mxu0 0.0
        %1080 = vmatprep.subr.mxu0 0.0
        %1081 = vmatpush1.msra.mxu0 0.0
        %1082 = vmatprep.subr.mxu0 0.0
        %1083 = vmatpush1.msra.mxu0 0.0
        %1084 = vmatprep.subr.mxu0 0.0
        %1085 = vmatpush1.msra.mxu0 0.0
        %1086 = vmatprep.subr.mxu0 0.0
        %1087 = vmatpush1.msra.mxu0 0.0
        %1088 = vmatprep.subr.mxu0 0.0
        %1089 = vmatpush1.msra.mxu0 0.0
        %1090 = vmatprep.subr.mxu0 0.0
        %1091 = vmatpush1.msra.mxu0 0.0
        %1092 = vmatprep.subr.mxu0 0.0
        %1093 = vmatpush1.msra.mxu0 0.0
        %1094 = vmatprep.subr.mxu0 0.0
        %1095 = vmatpush1.msra.mxu0 0.0
        %1096 = vmatprep.subr.mxu0 0.0
        %1097 = vmatpush1.msra.mxu0 0.0
        %1098 = vmatprep.subr.mxu0 0.0
        %1099 = vmatpush1.msra.mxu0 0.0
        %1100 = vmatprep.subr.mxu0 0.0
        %1101 = vmatpush1.msra.mxu0 0.0
        %1102 = vmatprep.subr.mxu0 0.0
        %1103 = vmatpush1.msra.mxu0 0.0
        %1104 = vmatprep.subr.mxu0 0.0
        %1105 = vmatpush1.msra.mxu0 0.0
        %1106 = vmatprep.subr.mxu0 0.0
        %1107 = vmatpush1.msra.mxu0 0.0
        %1108 = vmatprep.subr.mxu0 0.0
        %1109 = vmatpush1.msra.mxu0 0.0
        %1110 = vmatprep.subr.mxu0 0.0
        %1111 = vmatpush1.msra.mxu0 0.0
        %1112 = vmatprep.mubr.f32.mxu0 0.0
        %1113 = vmatmul.mubr.f32.gmra.mrb[0].mxu0 %v985
        %v1114 = vpop.f32.mrb[0].mxu0
        %v1115 = vadd.f32 0.0, %v1114
        %v1116 = vpop.f32.mrb[0].mxu0
        %1117 = vmatprep.mubr.f32.mxu0 0.0
        %1118 = vmatmul.mubr.f32.gmra.mrb[0].mxu0 %v988
        %v1119 = vpop.f32.mrb[0].mxu0
        %v1120 = vadd.f32 0.0, %v1119
        %v1121 = vpop.f32.mrb[0].mxu0
        %1122 = vmatprep.mubr.f32.mxu0 0.0
        %1123 = vmatmul.mubr.f32.gmra.mrb[0].mxu0 %v991
        %v1124 = vpop.f32.mrb[0].mxu0
        %v1125 = vadd.f32 0.0, %v1124
        %v1126 = vpop.f32.mrb[0].mxu0
        %1127 = vmatprep.mubr.f32.mxu0 0.0
        %1128 = vmatmul.mubr.f32.gmra.mrb[0].mxu0 %v994
        %v1129 = vpop.f32.mrb[0].mxu0
        %v1130 = vadd.f32 0.0, %v1129
        %v1131 = vpop.f32.mrb[0].mxu0
        %1132 = vmatprep.mubr.f32.mxu0 0.0
        %1133 = vmatmul.mubr.f32.gmra.mrb[0].mxu0 %v997
        %v1134 = vpop.f32.mrb[0].mxu0
        %v1135 = vadd.f32 0.0, %v1134
        %v1136 = vpop.f32.mrb[0].mxu0
        %1137 = vmatprep.mubr.f32.mxu0 0.0
        %1138 = vmatmul.mubr.f32.gmra.mrb[0].mxu0 %v1000
        %v1139 = vpop.f32.mrb[0].mxu0
        %v1140 = vadd.f32 0.0, %v1139
        %v1141 = vpop.f32.mrb[0].mxu0
        %1142 = vmatprep.mubr.f32.mxu0 0.0
        %1143 = vmatmul.mubr.f32.gmra.mrb[0].mxu0 %v1003
        %v1144 = vpop.f32.mrb[0].mxu0
        %v1145 = vadd.f32 0.0, %v1144
        %v1146 = vpop.f32.mrb[0].mxu0
        %1147 = vmatprep.mubr.f32.mxu0 0.0
        %1148 = vmatmul.mubr.f32.gmra.mrb[0].mxu0 %v1006
        %v1149 = vpop.f32.mrb[0].mxu0
        %v1150 = vadd.f32 0.0, %v1149
        %v1151 = vpop.f32.mrb[0].mxu0
        %1152 = vmatprep.mubr.f32.mxu0 0.0
        %1153 = vmatmul.mubr.f32.gmra.mrb[0].mxu0 %v1009
        %v1154 = vpop.f32.mrb[0].mxu0
        %v1155 = vadd.f32 0.0, %v1154
        %v1156 = vpop.f32.mrb[0].mxu0
        %1157 = vmatprep.mubr.f32.mxu0 0.0
        %1158 = vmatmul.mubr.f32.gmra.mrb[0].mxu0 %v1012
        %v1159 = vpop.f32.mrb[0].mxu0
        %v1160 = vadd.f32 0.0, %v1159
        %v1161 = vpop.f32.mrb[0].mxu0
        %1162 = vmatprep.mubr.f32.mxu0 0.0
        %1163 = vmatmul.mubr.f32.gmra.mrb[0].mxu0 %v1015
        %v1164 = vpop.f32.mrb[0].mxu0
        %v1165 = vadd.f32 0.0, %v1164
        %v1166 = vpop.f32.mrb[0].mxu0
        %1167 = vmatprep.mubr.f32.mxu0 0.0
        %1168 = vmatmul.mubr.f32.gmra.mrb[0].mxu0 %v1018
        %v1169 = vpop.f32.mrb[0].mxu0
        %v1170 = vadd.f32 0.0, %v1169
        %v1171 = vpop.f32.mrb[0].mxu0
        %1172 = vmatprep.mubr.f32.mxu0 0.0
        %1173 = vmatmul.mubr.f32.gmra.mrb[0].mxu0 %v1021
        %v1174 = vpop.f32.mrb[0].mxu0
        %v1175 = vadd.f32 0.0, %v1174
        %v1176 = vpop.f32.mrb[0].mxu0
        %1177 = vmatprep.mubr.f32.mxu0 0.0
        %1178 = vmatmul.mubr.f32.gmra.mrb[0].mxu0 %v1024
        %v1179 = vpop.f32.mrb[0].mxu0
        %v1180 = vadd.f32 0.0, %v1179
        %v1181 = vpop.f32.mrb[0].mxu0
        %1182 = vmatprep.mubr.f32.mxu0 0.0
        %1183 = vmatmul.mubr.f32.gmra.mrb[0].mxu0 %v1027
        %v1184 = vpop.f32.mrb[0].mxu0
        %v1185 = vadd.f32 0.0, %v1184
        %v1186 = vpop.f32.mrb[0].mxu0
        %1187 = vmatprep.mubr.f32.mxu0 0.0
        %1188 = vmatmul.mubr.f32.gmra.mrb[0].mxu0 %v1030
        %v1189 = vpop.f32.mrb[0].mxu0
        %v1190 = vadd.f32 0.0, %v1189
        %v1191 = vpop.f32.mrb[0].mxu0
        %1192 = vmatprep.mubr.f32.mxu0 0.0
        %1193 = vmatmul.mubr.f32.gmra.mrb[0].mxu0 %v1033
        %v1194 = vpop.f32.mrb[0].mxu0
        %v1195 = vadd.f32 0.0, %v1194
        %v1196 = vpop.f32.mrb[0].mxu0
        %1197 = vmatprep.mubr.f32.mxu0 0.0
        %1198 = vmatmul.mubr.f32.gmra.mrb[0].mxu0 %v1036
        %v1199 = vpop.f32.mrb[0].mxu0
        %v1200 = vadd.f32 0.0, %v1199
        %v1201 = vpop.f32.mrb[0].mxu0
        %1202 = vmatprep.mubr.f32.mxu0 0.0
        %1203 = vmatmul.mubr.f32.gmra.mrb[0].mxu0 %v1039
        %v1204 = vpop.f32.mrb[0].mxu0
        %v1205 = vadd.f32 0.0, %v1204
        %v1206 = vpop.f32.mrb[0].mxu0
        %1207 = vmatprep.mubr.f32.mxu0 0.0
        %1208 = vmatmul.mubr.f32.gmra.mrb[0].mxu0 %v1042
        %v1209 = vpop.f32.mrb[0].mxu0
        %v1210 = vadd.f32 0.0, %v1209
        %v1211 = vpop.f32.mrb[0].mxu0
        %1212 = vdwg.mxu0
        %1213 = vst [vmem:[%s217] sm:$0xff] %v1115
        %1214 = vst [vmem:[%s217 + $0x8] sm:$0xff] %v1120
        %1215 = vst [vmem:[%s217 + $0x10] sm:$0xff] %v1125
        %1216 = vst [vmem:[%s217 + $0x18] sm:$0xff] %v1130
        %1217 = vst [vmem:[%s217 + $0x20] sm:$0xff] %v1135
        %1218 = vst [vmem:[%s217 + $0x28] sm:$0xff] %v1140
        %1219 = vst [vmem:[%s217 + $0x30] sm:$0xff] %v1145
        %1220 = vst [vmem:[%s217 + $0x38] sm:$0xff] %v1150
        %1221 = vst [vmem:[%s217 + $0x40] sm:$0xff] %v1155
        %1222 = vst [vmem:[%s217 + $0x48] sm:$0xff] %v1160
        %1223 = vst [vmem:[%s217 + $0x50] sm:$0xff] %v1165
        %1224 = vst [vmem:[%s217 + $0x58] sm:$0xff] %v1170
        %1225 = vst [vmem:[%s217 + $0x60] sm:$0xff] %v1175
        %1226 = vst [vmem:[%s217 + $0x68] sm:$0xff] %v1180
        %1227 = vst [vmem:[%s217 + $0x70] sm:$0xff] %v1185
        %1228 = vst [vmem:[%s217 + $0x78] sm:$0xff] %v1190
        %1229 = vst [vmem:[%s217 + $0x80] sm:$0xff] %v1195
        %1230 = vst [vmem:[%s217 + $0x88] sm:$0xff] %v1200
        %1231 = vst [vmem:[%s217 + $0x90] sm:$0xff] %v1205
        %1232 = vst [vmem:[%s217 + $0x98] sm:$0xff] %v1210
        %s1233 = sand.u32 %s137, 1
        %s1234 = scalar_lea.sflag [#allocation4], %s1233
        %s1235 = sand.u32 %s137, 1
        %s1236 = smul.addr %s1235, 160
        %s1237 = scalar_lea.vmem [#allocation3], %s1236
        // Predicated region
        $region41: #{tpu_custom_call.1} parent=39 // pred_check
          %p1238 = pneg %p147
        $region42: #{tpu_custom_call.1} parent=39 // pred_check_branch
          %1240 = sbr.rel (%p1238) target = $region44
        $region43: #{tpu_custom_call.1} parent=39 // pred_region
          %s1242 = ssub.s32 2560, 2560
          %1243 = vsyncadd %s1234, %s1242
          %s1244 = smul.addr %s19, 128
          %s1245 = scalar_lea.hbm %s5, %s1244
          %s1246 = sshll.u32 %s1237, 4
          %s1247 = int_to_ptr.vmem [resolvable:$true] %s1246
          %1252 = dma.vmem_to_hbm [thread:$0]  %s1247, 2560, %s1245, %s1234, 128, 256, 8
        $region44: #{tpu_custom_call.1} parent=39 // pred_fallthru
          _
      $region40: #{tpu_custom_call.1} parent=5 // pred_fallthru
        _
      %p1253 = scmp.le.s32.totalorder 2, %s14
      // Predicated region
      $region45: #{tpu_custom_call.1} parent=5 // pred_check
        %p1254 = pneg %p1253
      $region46: #{tpu_custom_call.1} parent=5 // pred_check_branch
        %1256 = sbr.rel (%p1254) target = $region48
      $region47: #{tpu_custom_call.1} parent=5 // pred_region
        %s1257 = ssub.s32 %s14, 2
        // Predicated region
        $region49: #{tpu_custom_call.1} parent=47 // pred_check
          %p1258 = pneg %p153
        $region50: #{tpu_custom_call.1} parent=47 // pred_check_branch
          %1260 = sbr.rel (%p1258) target = $region52
        $region51: #{tpu_custom_call.1} parent=47 // pred_region
          %s1261 = sand.u32 %s138, 1
          %s1262 = scalar_lea.sflag [#allocation4], %s1261
          %s1263 = sand.u32 %s138, 1
          %s1264 = smul.addr %s1263, 160
          %s1265 = scalar_lea.vmem [#allocation3], %s1264
          %1266 = dma.done %s1262, 2560
        $region52: #{tpu_custom_call.1} parent=47 // pred_fallthru
          _
      $region48: #{tpu_custom_call.1} parent=5 // pred_fallthru
        _
    $region6: #{tpu_custom_call.1} parent=1 // loop_footer
      %s18 = sadd.s32 1, %s14
    $region7: #{tpu_custom_call.1} parent=1 // loop_footer_branch
      %13 = sbr.rel target = $region3
    $region8: #{tpu_custom_call.1} parent=1 // loop_exit
      _
    %1267 = vsyncpa [#allocation4], 1
    %s1268 = scalar_lea.sflag [#allocation4], 1
    %1269 = vsyncpa %s1268, 1

</llo_original>
